<compile_context>
chip_gen: v6e
topology: v6e:2x2x1
jax: 0.10.0
libtpu: 0.0.40
codegen_flags: <defaults>
</compile_context>

<pallas_src>
import jax
import jax.numpy as jnp
from jax.experimental import pallas as pl
from jax.experimental.pallas import tpu as pltpu

# ---- Problem constants (the PyTorch module has a fixed (1, 3, 32, 32) input). ----
C_IN = 3
H = W = 32
PAD_TOTAL = 4                                   # four conv layers, padding=1 each
HP, WP = H + 2 * PAD_TOTAL, W + 2 * PAD_TOTAL   # 40, 40
M_IN = H * W                                    # 1024
M = HP * WP                                     # 1600
LAYER_DIMS = ((8, 3), (22, 8), (32, 22), (43, 32))   # (cout, cin) per layer
ROW_OFF = (0, 8, 32, 64)                        # sublane-aligned row offset in the slab
SLAB_ROWS = 112                                 # 64 + 43 = 107, rounded up to 8-multiple
BIAS_COL = 32                                   # bias column (= max cin)
SLAB_COLS = BIAS_COL + 1                        # 33
C_OUT = LAYER_DIMS[-1][0]                       # 43


def _fused_convnet_kernel(x_ref, wb_ref, o_ref, xp_ref):
    # x_ref : (3, 1024)  flattened un-padded input
    # wb_ref: (112, 33)  packed weight/bias slab
    # o_ref : (43, 1600) flattened output on the final 40x40 grid
    # xp_ref: (3, 1600)  VMEM scratch holding the zero-padded input

    # --- 1. Place the 32x32 input at offset (4, 4) of the zeroed 40x40 grid. ---
    xp_ref[...] = jnp.zeros_like(xp_ref)
    for h in range(H):                           # 32 small static lane-offset copies
        dst = (h + PAD_TOTAL) * WP + PAD_TOTAL
        xp_ref[:, pl.ds(dst, W)] = x_ref[:, pl.ds(h * W, W)]
    x = xp_ref[...]

    # --- 2. Interior masks, generated in-kernel (spare VPU slots, no HBM traffic). ---
    p = jax.lax.broadcasted_iota(jnp.int32, (1, M), 1)
    # row index = p // 40 via an exact float trick (no integer vector division needed):
    # (p + 0.5) / 40 stays strictly inside (p//40, p//40 + 1), so truncation == floor.
    hh = ((p.astype(jnp.float32) + 0.5) * (1.0 / WP)).astype(jnp.int32)
    ww = p - WP * hh

    def interior_mask(off):
        m = (hh >= off) & (hh <= HP - 1 - off) & (ww >= off) & (ww <= WP - 1 - off)
        return m.astype(jnp.float32)             # (1, M): broadcasts over channel rows

    # --- 3. Four 1x1 convs = channel matmuls (bf16 operands, f32 accumulate). ---
    def layer(y, idx):
        cout, cin = LAYER_DIMS[idx]
        r0 = ROW_OFF[idx]
        w = wb_ref[r0:r0 + cout, 0:cin].astype(jnp.bfloat16)
        b = wb_ref[r0:r0 + cout, BIAS_COL:BIAS_COL + 1]          # (cout, 1) f32
        return jnp.dot(w, y.astype(jnp.bfloat16),
                       preferred_element_type=jnp.float32) + b

    y = layer(x, 0) * interior_mask(3)
    y = layer(y, 1) * interior_mask(2)
    y = layer(y, 2) * interior_mask(1)
    y = layer(y, 3)                              # final layer needs no mask
    o_ref[...] = jnp.tanh(y)


def pack_params(params):
    """Pack the 4 (w, b) pairs into one (112, 33) f32 slab. Called once, outside jit."""
    slab = jnp.zeros((SLAB_ROWS, SLAB_COLS), jnp.float32)
    for (w, b), r0 in zip(params, ROW_OFF):
        cout, cin = w.shape
        slab = slab.at[r0:r0 + cout, 0:cin].set(w)
        slab = slab.at[r0:r0 + cout, BIAS_COL].set(b)
    return slab


def model_forward(wb_slab, x1, x2):
    """Matches Model.forward(x1, x2): x2 is accepted but unused."""
    del x2
    assert x1.shape == (1, C_IN, H, W), x1.shape   # kernel is specialized to the spec shape
    # (1, 3, 32, 32) -> (3, 1024): contiguous, metadata-only (no extra HLO fusion / DMA).
    x2d = x1.reshape(C_IN, M_IN)

    flops = 2 * sum(co * ci for co, ci in LAYER_DIMS) * M          # ~7.3 MFLOP
    bytes_accessed = 4 * (C_IN * M_IN + SLAB_ROWS * SLAB_COLS + C_OUT * M)

    out2d = pl.pallas_call(
        _fused_convnet_kernel,
        out_shape=jax.ShapeDtypeStruct((C_OUT, M), jnp.float32),
        in_specs=[pl.BlockSpec((C_IN, M_IN), lambda: (0, 0)),
                  pl.BlockSpec((SLAB_ROWS, SLAB_COLS), lambda: (0, 0))],
        out_specs=pl.BlockSpec((C_OUT, M), lambda: (0, 0)),
        scratch_shapes=[pltpu.VMEM((C_IN, M), jnp.float32)],
        cost_estimate=pl.CostEstimate(flops=flops,
                                      transcendentals=C_OUT * M,
                                      bytes_accessed=bytes_accessed),
    )(x2d, wb_slab)

    # (43, 1600) -> (1, 43, 40, 40): contiguous, metadata-only.
    return out2d.reshape(1, C_OUT, HP, WP)


def init_params(key):
    """Deterministic parameter init mimicking Conv2d(Cin, Cout, 1, stride=1, padding=1)."""
    params = []
    for i, (cout, cin) in enumerate(LAYER_DIMS):
        kw, kb = jax.random.split(jax.random.fold_in(key, i))
        bound = 1.0 / jnp.sqrt(float(cin))       # fan_in = cin * 1 * 1
        w = jax.random.uniform(kw, (cout, cin), jnp.float32, -bound, bound)
        b = jax.random.uniform(kb, (cout,), jnp.float32, -bound, bound)
        params.append((w, b))
    return params


def _reference_forward(params, x1):
    """Plain-jnp reference with the same bf16-operand / f32-accumulate matmul rounding."""
    x = x1
    for i, (w, b) in enumerate(params):
        xp = jnp.pad(x, ((0, 0), (0, 0), (1, 1), (1, 1)))
        y = jnp.einsum('nchw,oc->nohw',
                       xp.astype(jnp.bfloat16), w.astype(jnp.bfloat16),
                       preferred_element_type=jnp.float32) + b[None, :, None, None]
        x = jnp.tanh(y) if i == len(params) - 1 else y
    return x


if __name__ == "__main__":
    key = jax.random.PRNGKey(0)
    k_params, k_x1, k_x2 = jax.random.split(key, 3)

    params = init_params(k_params)
    wb_slab = pack_params(params)                # one-time packing, outside the jitted forward
    x1 = jax.random.normal(k_x1, (1, 3, 32, 32), jnp.float32)
    x2 = jax.random.normal(k_x2, (1, 3, 32, 32), jnp.float32)   # unused by forward

    fwd = jax.jit(model_forward)
    out = jax.block_until_ready(fwd(wb_slab, x1, x2))

    assert out.shape == (1, 43, 40, 40), out.shape
    ref = _reference_forward(params, x1)
    # Both sides round matmul operands to bf16 at the same points and accumulate in f32;
    # the residual difference (accumulation order + rare 1-ulp borderline roundings
    # propagated through 4 layers) is well below 5e-3 on tanh-bounded outputs.
    assert jnp.allclose(out, ref, atol=5e-3, rtol=0.0), \
        float(jnp.max(jnp.abs(out - ref)))

    print("KERNEL_OK")
</pallas_src>

<mosaic_0001>
module attributes {stable_mosaic.version = 11 : i64} {
  func.func @_fused_convnet_kernel(%arg0: memref<3x1024xf32, #tpu.memory_space<vmem>>, %arg1: memref<112x33xf32, #tpu.memory_space<vmem>>, %arg2: memref<43x1600xf32, #tpu.memory_space<vmem>>, %arg3: memref<3x1600xf32, #tpu.memory_space<vmem>>) attributes {dimension_semantics = [], scalar_prefetch = 0 : i64, scratch_operands = 1 : i64, tpu.core_type = #tpu.core_type<tc>} {
    %cst = arith.constant 0.000000e+00 : f32
    %0 = vector.broadcast %cst : f32 to vector<3x1600xf32>
    %c0 = arith.constant 0 : index
    %c0_0 = arith.constant 0 : index
    %1 = vector.load %arg3[%c0, %c0_0] : memref<3x1600xf32, #tpu.memory_space<vmem>>, vector<3x1600xf32>
    tpu.vector_store %arg3[%c0, %c0_0], %0 {strides = array<i32>} : memref<3x1600xf32, #tpu.memory_space<vmem>>, vector<3x1600xf32>,
    %c0_1 = arith.constant 0 : index
    %c0_2 = arith.constant 0 : index
    %2 = vector.load %arg0[%c0_1, %c0_2] : memref<3x1024xf32, #tpu.memory_space<vmem>>, vector<3x32xf32>
    %c0_3 = arith.constant 0 : index
    %c164 = arith.constant 164 : index
    %3 = vector.load %arg3[%c0_3, %c164] : memref<3x1600xf32, #tpu.memory_space<vmem>>, vector<3x32xf32>
    tpu.vector_store %arg3[%c0_3, %c164], %2 {strides = array<i32>} : memref<3x1600xf32, #tpu.memory_space<vmem>>, vector<3x32xf32>,
    %c0_4 = arith.constant 0 : index
    %c32 = arith.constant 32 : index
    %4 = vector.load %arg0[%c0_4, %c32] : memref<3x1024xf32, #tpu.memory_space<vmem>>, vector<3x32xf32>
    %c0_5 = arith.constant 0 : index
    %c204 = arith.constant 204 : index
    %5 = vector.load %arg3[%c0_5, %c204] : memref<3x1600xf32, #tpu.memory_space<vmem>>, vector<3x32xf32>
    tpu.vector_store %arg3[%c0_5, %c204], %4 {strides = array<i32>} : memref<3x1600xf32, #tpu.memory_space<vmem>>, vector<3x32xf32>,
    %c0_6 = arith.constant 0 : index
    %c64 = arith.constant 64 : index
    %6 = vector.load %arg0[%c0_6, %c64] : memref<3x1024xf32, #tpu.memory_space<vmem>>, vector<3x32xf32>
    %c0_7 = arith.constant 0 : index
    %c244 = arith.constant 244 : index
    %7 = vector.load %arg3[%c0_7, %c244] : memref<3x1600xf32, #tpu.memory_space<vmem>>, vector<3x32xf32>
    tpu.vector_store %arg3[%c0_7, %c244], %6 {strides = array<i32>} : memref<3x1600xf32, #tpu.memory_space<vmem>>, vector<3x32xf32>,
    %c0_8 = arith.constant 0 : index
    %c96 = arith.constant 96 : index
    %8 = vector.load %arg0[%c0_8, %c96] : memref<3x1024xf32, #tpu.memory_space<vmem>>, vector<3x32xf32>
    %c0_9 = arith.constant 0 : index
    %c284 = arith.constant 284 : index
    %9 = vector.load %arg3[%c0_9, %c284] : memref<3x1600xf32, #tpu.memory_space<vmem>>, vector<3x32xf32>
    tpu.vector_store %arg3[%c0_9, %c284], %8 {strides = array<i32>} : memref<3x1600xf32, #tpu.memory_space<vmem>>, vector<3x32xf32>,
    %c0_10 = arith.constant 0 : index
    %c128 = arith.constant 128 : index
    %10 = vector.load %arg0[%c0_10, %c128] : memref<3x1024xf32, #tpu.memory_space<vmem>>, vector<3x32xf32>
    %c0_11 = arith.constant 0 : index
    %c324 = arith.constant 324 : index
    %11 = vector.load %arg3[%c0_11, %c324] : memref<3x1600xf32, #tpu.memory_space<vmem>>, vector<3x32xf32>
    tpu.vector_store %arg3[%c0_11, %c324], %10 {strides = array<i32>} : memref<3x1600xf32, #tpu.memory_space<vmem>>, vector<3x32xf32>,
    %c0_12 = arith.constant 0 : index
    %c160 = arith.constant 160 : index
    %12 = vector.load %arg0[%c0_12, %c160] : memref<3x1024xf32, #tpu.memory_space<vmem>>, vector<3x32xf32>
    %c0_13 = arith.constant 0 : index
    %c364 = arith.constant 364 : index
    %13 = vector.load %arg3[%c0_13, %c364] : memref<3x1600xf32, #tpu.memory_space<vmem>>, vector<3x32xf32>
    tpu.vector_store %arg3[%c0_13, %c364], %12 {strides = array<i32>} : memref<3x1600xf32, #tpu.memory_space<vmem>>, vector<3x32xf32>,
    %c0_14 = arith.constant 0 : index
    %c192 = arith.constant 192 : index
    %14 = vector.load %arg0[%c0_14, %c192] : memref<3x1024xf32, #tpu.memory_space<vmem>>, vector<3x32xf32>
    %c0_15 = arith.constant 0 : index
    %c404 = arith.constant 404 : index
    %15 = vector.load %arg3[%c0_15, %c404] : memref<3x1600xf32, #tpu.memory_space<vmem>>, vector<3x32xf32>
    tpu.vector_store %arg3[%c0_15, %c404], %14 {strides = array<i32>} : memref<3x1600xf32, #tpu.memory_space<vmem>>, vector<3x32xf32>,
    %c0_16 = arith.constant 0 : index
    %c224 = arith.constant 224 : index
    %16 = vector.load %arg0[%c0_16, %c224] : memref<3x1024xf32, #tpu.memory_space<vmem>>, vector<3x32xf32>
    %c0_17 = arith.constant 0 : index
    %c444 = arith.constant 444 : index
    %17 = vector.load %arg3[%c0_17, %c444] : memref<3x1600xf32, #tpu.memory_space<vmem>>, vector<3x32xf32>
    tpu.vector_store %arg3[%c0_17, %c444], %16 {strides = array<i32>} : memref<3x1600xf32, #tpu.memory_space<vmem>>, vector<3x32xf32>,
    %c0_18 = arith.constant 0 : index
    %c256 = arith.constant 256 : index
    %18 = vector.load %arg0[%c0_18, %c256] : memref<3x1024xf32, #tpu.memory_space<vmem>>, vector<3x32xf32>
    %c0_19 = arith.constant 0 : index
    %c484 = arith.constant 484 : index
    %19 = vector.load %arg3[%c0_19, %c484] : memref<3x1600xf32, #tpu.memory_space<vmem>>, vector<3x32xf32>
    tpu.vector_store %arg3[%c0_19, %c484], %18 {strides = array<i32>} : memref<3x1600xf32, #tpu.memory_space<vmem>>, vector<3x32xf32>,
    %c0_20 = arith.constant 0 : index
    %c288 = arith.constant 288 : index
    %20 = vector.load %arg0[%c0_20, %c288] : memref<3x1024xf32, #tpu.memory_space<vmem>>, vector<3x32xf32>
    %c0_21 = arith.constant 0 : index
    %c524 = arith.constant 524 : index
    %21 = vector.load %arg3[%c0_21, %c524] : memref<3x1600xf32, #tpu.memory_space<vmem>>, vector<3x32xf32>
    tpu.vector_store %arg3[%c0_21, %c524], %20 {strides = array<i32>} : memref<3x1600xf32, #tpu.memory_space<vmem>>, vector<3x32xf32>,
    %c0_22 = arith.constant 0 : index
    %c320 = arith.constant 320 : index
    %22 = vector.load %arg0[%c0_22, %c320] : memref<3x1024xf32, #tpu.memory_space<vmem>>, vector<3x32xf32>
    %c0_23 = arith.constant 0 : index
    %c564 = arith.constant 564 : index
    %23 = vector.load %arg3[%c0_23, %c564] : memref<3x1600xf32, #tpu.memory_space<vmem>>, vector<3x32xf32>
    tpu.vector_store %arg3[%c0_23, %c564], %22 {strides = array<i32>} : memref<3x1600xf32, #tpu.memory_space<vmem>>, vector<3x32xf32>,
    %c0_24 = arith.constant 0 : index
    %c352 = arith.constant 352 : index
    %24 = vector.load %arg0[%c0_24, %c352] : memref<3x1024xf32, #tpu.memory_space<vmem>>, vector<3x32xf32>
    %c0_25 = arith.constant 0 : index
    %c604 = arith.constant 604 : index
    %25 = vector.load %arg3[%c0_25, %c604] : memref<3x1600xf32, #tpu.memory_space<vmem>>, vector<3x32xf32>
    tpu.vector_store %arg3[%c0_25, %c604], %24 {strides = array<i32>} : memref<3x1600xf32, #tpu.memory_space<vmem>>, vector<3x32xf32>,
    %c0_26 = arith.constant 0 : index
    %c384 = arith.constant 384 : index
    %26 = vector.load %arg0[%c0_26, %c384] : memref<3x1024xf32, #tpu.memory_space<vmem>>, vector<3x32xf32>
    %c0_27 = arith.constant 0 : index
    %c644 = arith.constant 644 : index
    %27 = vector.load %arg3[%c0_27, %c644] : memref<3x1600xf32, #tpu.memory_space<vmem>>, vector<3x32xf32>
    tpu.vector_store %arg3[%c0_27, %c644], %26 {strides = array<i32>} : memref<3x1600xf32, #tpu.memory_space<vmem>>, vector<3x32xf32>,
    %c0_28 = arith.constant 0 : index
    %c416 = arith.constant 416 : index
    %28 = vector.load %arg0[%c0_28, %c416] : memref<3x1024xf32, #tpu.memory_space<vmem>>, vector<3x32xf32>
    %c0_29 = arith.constant 0 : index
    %c684 = arith.constant 684 : index
    %29 = vector.load %arg3[%c0_29, %c684] : memref<3x1600xf32, #tpu.memory_space<vmem>>, vector<3x32xf32>
    tpu.vector_store %arg3[%c0_29, %c684], %28 {strides = array<i32>} : memref<3x1600xf32, #tpu.memory_space<vmem>>, vector<3x32xf32>,
    %c0_30 = arith.constant 0 : index
    %c448 = arith.constant 448 : index
    %30 = vector.load %arg0[%c0_30, %c448] : memref<3x1024xf32, #tpu.memory_space<vmem>>, vector<3x32xf32>
    %c0_31 = arith.constant 0 : index
    %c724 = arith.constant 724 : index
    %31 = vector.load %arg3[%c0_31, %c724] : memref<3x1600xf32, #tpu.memory_space<vmem>>, vector<3x32xf32>
    tpu.vector_store %arg3[%c0_31, %c724], %30 {strides = array<i32>} : memref<3x1600xf32, #tpu.memory_space<vmem>>, vector<3x32xf32>,
    %c0_32 = arith.constant 0 : index
    %c480 = arith.constant 480 : index
    %32 = vector.load %arg0[%c0_32, %c480] : memref<3x1024xf32, #tpu.memory_space<vmem>>, vector<3x32xf32>
    %c0_33 = arith.constant 0 : index
    %c764 = arith.constant 764 : index
    %33 = vector.load %arg3[%c0_33, %c764] : memref<3x1600xf32, #tpu.memory_space<vmem>>, vector<3x32xf32>
    tpu.vector_store %arg3[%c0_33, %c764], %32 {strides = array<i32>} : memref<3x1600xf32, #tpu.memory_space<vmem>>, vector<3x32xf32>,
    %c0_34 = arith.constant 0 : index
    %c512 = arith.constant 512 : index
    %34 = vector.load %arg0[%c0_34, %c512] : memref<3x1024xf32, #tpu.memory_space<vmem>>, vector<3x32xf32>
    %c0_35 = arith.constant 0 : index
    %c804 = arith.constant 804 : index
    %35 = vector.load %arg3[%c0_35, %c804] : memref<3x1600xf32, #tpu.memory_space<vmem>>, vector<3x32xf32>
    tpu.vector_store %arg3[%c0_35, %c804], %34 {strides = array<i32>} : memref<3x1600xf32, #tpu.memory_space<vmem>>, vector<3x32xf32>,
    %c0_36 = arith.constant 0 : index
    %c544 = arith.constant 544 : index
    %36 = vector.load %arg0[%c0_36, %c544] : memref<3x1024xf32, #tpu.memory_space<vmem>>, vector<3x32xf32>
    %c0_37 = arith.constant 0 : index
    %c844 = arith.constant 844 : index
    %37 = vector.load %arg3[%c0_37, %c844] : memref<3x1600xf32, #tpu.memory_space<vmem>>, vector<3x32xf32>
    tpu.vector_store %arg3[%c0_37, %c844], %36 {strides = array<i32>} : memref<3x1600xf32, #tpu.memory_space<vmem>>, vector<3x32xf32>,
    %c0_38 = arith.constant 0 : index
    %c576 = arith.constant 576 : index
    %38 = vector.load %arg0[%c0_38, %c576] : memref<3x1024xf32, #tpu.memory_space<vmem>>, vector<3x32xf32>
    %c0_39 = arith.constant 0 : index
    %c884 = arith.constant 884 : index
    %39 = vector.load %arg3[%c0_39, %c884] : memref<3x1600xf32, #tpu.memory_space<vmem>>, vector<3x32xf32>
    tpu.vector_store %arg3[%c0_39, %c884], %38 {strides = array<i32>} : memref<3x1600xf32, #tpu.memory_space<vmem>>, vector<3x32xf32>,
    %c0_40 = arith.constant 0 : index
    %c608 = arith.constant 608 : index
    %40 = vector.load %arg0[%c0_40, %c608] : memref<3x1024xf32, #tpu.memory_space<vmem>>, vector<3x32xf32>
    %c0_41 = arith.constant 0 : index
    %c924 = arith.constant 924 : index
    %41 = vector.load %arg3[%c0_41, %c924] : memref<3x1600xf32, #tpu.memory_space<vmem>>, vector<3x32xf32>
    tpu.vector_store %arg3[%c0_41, %c924], %40 {strides = array<i32>} : memref<3x1600xf32, #tpu.memory_space<vmem>>, vector<3x32xf32>,
    %c0_42 = arith.constant 0 : index
    %c640 = arith.constant 640 : index
    %42 = vector.load %arg0[%c0_42, %c640] : memref<3x1024xf32, #tpu.memory_space<vmem>>, vector<3x32xf32>
    %c0_43 = arith.constant 0 : index
    %c964 = arith.constant 964 : index
    %43 = vector.load %arg3[%c0_43, %c964] : memref<3x1600xf32, #tpu.memory_space<vmem>>, vector<3x32xf32>
    tpu.vector_store %arg3[%c0_43, %c964], %42 {strides = array<i32>} : memref<3x1600xf32, #tpu.memory_space<vmem>>, vector<3x32xf32>,
    %c0_44 = arith.constant 0 : index
    %c672 = arith.constant 672 : index
    %44 = vector.load %arg0[%c0_44, %c672] : memref<3x1024xf32, #tpu.memory_space<vmem>>, vector<3x32xf32>
    %c0_45 = arith.constant 0 : index
    %c1004 = arith.constant 1004 : index
    %45 = vector.load %arg3[%c0_45, %c1004] : memref<3x1600xf32, #tpu.memory_space<vmem>>, vector<3x32xf32>
    tpu.vector_store %arg3[%c0_45, %c1004], %44 {strides = array<i32>} : memref<3x1600xf32, #tpu.memory_space<vmem>>, vector<3x32xf32>,
    %c0_46 = arith.constant 0 : index
    %c704 = arith.constant 704 : index
    %46 = vector.load %arg0[%c0_46, %c704] : memref<3x1024xf32, #tpu.memory_space<vmem>>, vector<3x32xf32>
    %c0_47 = arith.constant 0 : index
    %c1044 = arith.constant 1044 : index
    %47 = vector.load %arg3[%c0_47, %c1044] : memref<3x1600xf32, #tpu.memory_space<vmem>>, vector<3x32xf32>
    tpu.vector_store %arg3[%c0_47, %c1044], %46 {strides = array<i32>} : memref<3x1600xf32, #tpu.memory_space<vmem>>, vector<3x32xf32>,
    %c0_48 = arith.constant 0 : index
    %c736 = arith.constant 736 : index
    %48 = vector.load %arg0[%c0_48, %c736] : memref<3x1024xf32, #tpu.memory_space<vmem>>, vector<3x32xf32>
    %c0_49 = arith.constant 0 : index
    %c1084 = arith.constant 1084 : index
    %49 = vector.load %arg3[%c0_49, %c1084] : memref<3x1600xf32, #tpu.memory_space<vmem>>, vector<3x32xf32>
    tpu.vector_store %arg3[%c0_49, %c1084], %48 {strides = array<i32>} : memref<3x1600xf32, #tpu.memory_space<vmem>>, vector<3x32xf32>,
    %c0_50 = arith.constant 0 : index
    %c768 = arith.constant 768 : index
    %50 = vector.load %arg0[%c0_50, %c768] : memref<3x1024xf32, #tpu.memory_space<vmem>>, vector<3x32xf32>
    %c0_51 = arith.constant 0 : index
    %c1124 = arith.constant 1124 : index
    %51 = vector.load %arg3[%c0_51, %c1124] : memref<3x1600xf32, #tpu.memory_space<vmem>>, vector<3x32xf32>
    tpu.vector_store %arg3[%c0_51, %c1124], %50 {strides = array<i32>} : memref<3x1600xf32, #tpu.memory_space<vmem>>, vector<3x32xf32>,
    %c0_52 = arith.constant 0 : index
    %c800 = arith.constant 800 : index
    %52 = vector.load %arg0[%c0_52, %c800] : memref<3x1024xf32, #tpu.memory_space<vmem>>, vector<3x32xf32>
    %c0_53 = arith.constant 0 : index
    %c1164 = arith.constant 1164 : index
    %53 = vector.load %arg3[%c0_53, %c1164] : memref<3x1600xf32, #tpu.memory_space<vmem>>, vector<3x32xf32>
    tpu.vector_store %arg3[%c0_53, %c1164], %52 {strides = array<i32>} : memref<3x1600xf32, #tpu.memory_space<vmem>>, vector<3x32xf32>,
    %c0_54 = arith.constant 0 : index
    %c832 = arith.constant 832 : index
    %54 = vector.load %arg0[%c0_54, %c832] : memref<3x1024xf32, #tpu.memory_space<vmem>>, vector<3x32xf32>
    %c0_55 = arith.constant 0 : index
    %c1204 = arith.constant 1204 : index
    %55 = vector.load %arg3[%c0_55, %c1204] : memref<3x1600xf32, #tpu.memory_space<vmem>>, vector<3x32xf32>
    tpu.vector_store %arg3[%c0_55, %c1204], %54 {strides = array<i32>} : memref<3x1600xf32, #tpu.memory_space<vmem>>, vector<3x32xf32>,
    %c0_56 = arith.constant 0 : index
    %c864 = arith.constant 864 : index
    %56 = vector.load %arg0[%c0_56, %c864] : memref<3x1024xf32, #tpu.memory_space<vmem>>, vector<3x32xf32>
    %c0_57 = arith.constant 0 : index
    %c1244 = arith.constant 1244 : index
    %57 = vector.load %arg3[%c0_57, %c1244] : memref<3x1600xf32, #tpu.memory_space<vmem>>, vector<3x32xf32>
    tpu.vector_store %arg3[%c0_57, %c1244], %56 {strides = array<i32>} : memref<3x1600xf32, #tpu.memory_space<vmem>>, vector<3x32xf32>,
    %c0_58 = arith.constant 0 : index
    %c896 = arith.constant 896 : index
    %58 = vector.load %arg0[%c0_58, %c896] : memref<3x1024xf32, #tpu.memory_space<vmem>>, vector<3x32xf32>
    %c0_59 = arith.constant 0 : index
    %c1284 = arith.constant 1284 : index
    %59 = vector.load %arg3[%c0_59, %c1284] : memref<3x1600xf32, #tpu.memory_space<vmem>>, vector<3x32xf32>
    tpu.vector_store %arg3[%c0_59, %c1284], %58 {strides = array<i32>} : memref<3x1600xf32, #tpu.memory_space<vmem>>, vector<3x32xf32>,
    %c0_60 = arith.constant 0 : index
    %c928 = arith.constant 928 : index
    %60 = vector.load %arg0[%c0_60, %c928] : memref<3x1024xf32, #tpu.memory_space<vmem>>, vector<3x32xf32>
    %c0_61 = arith.constant 0 : index
    %c1324 = arith.constant 1324 : index
    %61 = vector.load %arg3[%c0_61, %c1324] : memref<3x1600xf32, #tpu.memory_space<vmem>>, vector<3x32xf32>
    tpu.vector_store %arg3[%c0_61, %c1324], %60 {strides = array<i32>} : memref<3x1600xf32, #tpu.memory_space<vmem>>, vector<3x32xf32>,
    %c0_62 = arith.constant 0 : index
    %c960 = arith.constant 960 : index
    %62 = vector.load %arg0[%c0_62, %c960] : memref<3x1024xf32, #tpu.memory_space<vmem>>, vector<3x32xf32>
    %c0_63 = arith.constant 0 : index
    %c1364 = arith.constant 1364 : index
    %63 = vector.load %arg3[%c0_63, %c1364] : memref<3x1600xf32, #tpu.memory_space<vmem>>, vector<3x32xf32>
    tpu.vector_store %arg3[%c0_63, %c1364], %62 {strides = array<i32>} : memref<3x1600xf32, #tpu.memory_space<vmem>>, vector<3x32xf32>,
    %c0_64 = arith.constant 0 : index
    %c992 = arith.constant 992 : index
    %64 = vector.load %arg0[%c0_64, %c992] : memref<3x1024xf32, #tpu.memory_space<vmem>>, vector<3x32xf32>
    %c0_65 = arith.constant 0 : index
    %c1404 = arith.constant 1404 : index
    %65 = vector.load %arg3[%c0_65, %c1404] : memref<3x1600xf32, #tpu.memory_space<vmem>>, vector<3x32xf32>
    tpu.vector_store %arg3[%c0_65, %c1404], %64 {strides = array<i32>} : memref<3x1600xf32, #tpu.memory_space<vmem>>, vector<3x32xf32>,
    %c0_66 = arith.constant 0 : index
    %c0_67 = arith.constant 0 : index
    %66 = vector.load %arg3[%c0_66, %c0_67] : memref<3x1600xf32, #tpu.memory_space<vmem>>, vector<3x1600xf32>
    %67 = tpu.iota {dimensions = array<i32: 1>} : vector<1x1600xi32>
    %68 = arith.sitofp %67 : vector<1x1600xi32> to vector<1x1600xf32>
    %cst_68 = arith.constant 5.000000e-01 : f32
    %69 = vector.broadcast %cst_68 : f32 to vector<1x1600xf32>
    %70 = arith.addf %68, %69 : vector<1x1600xf32>
    %cst_69 = arith.constant 2.500000e-02 : f32
    %71 = vector.broadcast %cst_69 : f32 to vector<1x1600xf32>
    %72 = arith.mulf %70, %71 : vector<1x1600xf32>
    %73 = arith.fptosi %72 : vector<1x1600xf32> to vector<1x1600xi32>
    %c40_i32 = arith.constant 40 : i32
    %74 = vector.broadcast %c40_i32 : i32 to vector<1x1600xi32>
    %75 = arith.muli %74, %73 : vector<1x1600xi32>
    %76 = arith.subi %67, %75 : vector<1x1600xi32>
    %c0_70 = arith.constant 0 : index
    %c0_71 = arith.constant 0 : index
    %77 = vector.load %arg1[%c0_70, %c0_71] : memref<112x33xf32, #tpu.memory_space<vmem>>, vector<8x3xf32>
    %78 = arith.truncf %77 : vector<8x3xf32> to vector<8x3xbf16>
    %c0_72 = arith.constant 0 : index
    %c32_73 = arith.constant 32 : index
    %79 = vector.load %arg1[%c0_72, %c32_73] : memref<112x33xf32, #tpu.memory_space<vmem>>, vector<8x1xf32>
    %80 = arith.truncf %66 : vector<3x1600xf32> to vector<3x1600xbf16>
    %cst_74 = arith.constant dense<0.000000e+00> : vector<8x1600xf32>
    %81 = tpu.matmul %78, %80, %cst_74 {dimension_numbers = #tpu.dot_dimension_numbers<[1], [0], [0], [1], [0, 0, 1, 1], [], []>} : vector<8x3xbf16>, vector<3x1600xbf16>, vector<8x1600xf32> -> vector<8x1600xf32>
    %82 = vector.broadcast %79 : vector<8x1xf32> to vector<8x1600xf32>
    %83 = arith.addf %81, %82 : vector<8x1600xf32>
    %c3_i32 = arith.constant 3 : i32
    %84 = vector.broadcast %c3_i32 : i32 to vector<1x1600xi32>
    %85 = arith.cmpi sge, %73, %84 : vector<1x1600xi32>
    %c36_i32 = arith.constant 36 : i32
    %86 = vector.broadcast %c36_i32 : i32 to vector<1x1600xi32>
    %87 = arith.cmpi sle, %73, %86 : vector<1x1600xi32>
    %88 = arith.andi %85, %87 : vector<1x1600xi1>
    %c3_i32_75 = arith.constant 3 : i32
    %89 = vector.broadcast %c3_i32_75 : i32 to vector<1x1600xi32>
    %90 = arith.cmpi sge, %76, %89 : vector<1x1600xi32>
    %91 = arith.andi %88, %90 : vector<1x1600xi1>
    %c36_i32_76 = arith.constant 36 : i32
    %92 = vector.broadcast %c36_i32_76 : i32 to vector<1x1600xi32>
    %93 = arith.cmpi sle, %76, %92 : vector<1x1600xi32>
    %94 = arith.andi %91, %93 : vector<1x1600xi1>
    %95 = arith.extui %94 : vector<1x1600xi1> to vector<1x1600xi32>
    %96 = arith.sitofp %95 : vector<1x1600xi32> to vector<1x1600xf32>
    %97 = vector.broadcast %96 : vector<1x1600xf32> to vector<8x1600xf32>
    %98 = arith.mulf %83, %97 : vector<8x1600xf32>
    %c8 = arith.constant 8 : index
    %c0_77 = arith.constant 0 : index
    %99 = vector.load %arg1[%c8, %c0_77] : memref<112x33xf32, #tpu.memory_space<vmem>>, vector<22x8xf32>
    %100 = arith.truncf %99 : vector<22x8xf32> to vector<22x8xbf16>
    %c8_78 = arith.constant 8 : index
    %c32_79 = arith.constant 32 : index
    %101 = vector.load %arg1[%c8_78, %c32_79] : memref<112x33xf32, #tpu.memory_space<vmem>>, vector<22x1xf32>
    %102 = arith.truncf %98 : vector<8x1600xf32> to vector<8x1600xbf16>
    %cst_80 = arith.constant dense<0.000000e+00> : vector<22x1600xf32>
    %103 = tpu.matmul %100, %102, %cst_80 {dimension_numbers = #tpu.dot_dimension_numbers<[1], [0], [0], [1], [0, 0, 1, 1], [], []>} : vector<22x8xbf16>, vector<8x1600xbf16>, vector<22x1600xf32> -> vector<22x1600xf32>
    %104 = vector.broadcast %101 : vector<22x1xf32> to vector<22x1600xf32>
    %105 = arith.addf %103, %104 : vector<22x1600xf32>
    %c2_i32 = arith.constant 2 : i32
    %106 = vector.broadcast %c2_i32 : i32 to vector<1x1600xi32>
    %107 = arith.cmpi sge, %73, %106 : vector<1x1600xi32>
    %c37_i32 = arith.constant 37 : i32
    %108 = vector.broadcast %c37_i32 : i32 to vector<1x1600xi32>
    %109 = arith.cmpi sle, %73, %108 : vector<1x1600xi32>
    %110 = arith.andi %107, %109 : vector<1x1600xi1>
    %c2_i32_81 = arith.constant 2 : i32
    %111 = vector.broadcast %c2_i32_81 : i32 to vector<1x1600xi32>
    %112 = arith.cmpi sge, %76, %111 : vector<1x1600xi32>
    %113 = arith.andi %110, %112 : vector<1x1600xi1>
    %c37_i32_82 = arith.constant 37 : i32
    %114 = vector.broadcast %c37_i32_82 : i32 to vector<1x1600xi32>
    %115 = arith.cmpi sle, %76, %114 : vector<1x1600xi32>
    %116 = arith.andi %113, %115 : vector<1x1600xi1>
    %117 = arith.extui %116 : vector<1x1600xi1> to vector<1x1600xi32>
    %118 = arith.sitofp %117 : vector<1x1600xi32> to vector<1x1600xf32>
    %119 = vector.broadcast %118 : vector<1x1600xf32> to vector<22x1600xf32>
    %120 = arith.mulf %105, %119 : vector<22x1600xf32>
    %c32_83 = arith.constant 32 : index
    %c0_84 = arith.constant 0 : index
    %121 = vector.load %arg1[%c32_83, %c0_84] : memref<112x33xf32, #tpu.memory_space<vmem>>, vector<32x22xf32>
    %122 = arith.truncf %121 : vector<32x22xf32> to vector<32x22xbf16>
    %c32_85 = arith.constant 32 : index
    %c32_86 = arith.constant 32 : index
    %123 = vector.load %arg1[%c32_85, %c32_86] : memref<112x33xf32, #tpu.memory_space<vmem>>, vector<32x1xf32>
    %124 = arith.truncf %120 : vector<22x1600xf32> to vector<22x1600xbf16>
    %cst_87 = arith.constant dense<0.000000e+00> : vector<32x1600xf32>
    %125 = tpu.matmul %122, %124, %cst_87 {dimension_numbers = #tpu.dot_dimension_numbers<[1], [0], [0], [1], [0, 0, 1, 1], [], []>} : vector<32x22xbf16>, vector<22x1600xbf16>, vector<32x1600xf32> -> vector<32x1600xf32>
    %126 = vector.broadcast %123 : vector<32x1xf32> to vector<32x1600xf32>
    %127 = arith.addf %125, %126 : vector<32x1600xf32>
    %c1_i32 = arith.constant 1 : i32
    %128 = vector.broadcast %c1_i32 : i32 to vector<1x1600xi32>
    %129 = arith.cmpi sge, %73, %128 : vector<1x1600xi32>
    %c38_i32 = arith.constant 38 : i32
    %130 = vector.broadcast %c38_i32 : i32 to vector<1x1600xi32>
    %131 = arith.cmpi sle, %73, %130 : vector<1x1600xi32>
    %132 = arith.andi %129, %131 : vector<1x1600xi1>
    %c1_i32_88 = arith.constant 1 : i32
    %133 = vector.broadcast %c1_i32_88 : i32 to vector<1x1600xi32>
    %134 = arith.cmpi sge, %76, %133 : vector<1x1600xi32>
    %135 = arith.andi %132, %134 : vector<1x1600xi1>
    %c38_i32_89 = arith.constant 38 : i32
    %136 = vector.broadcast %c38_i32_89 : i32 to vector<1x1600xi32>
    %137 = arith.cmpi sle, %76, %136 : vector<1x1600xi32>
    %138 = arith.andi %135, %137 : vector<1x1600xi1>
    %139 = arith.extui %138 : vector<1x1600xi1> to vector<1x1600xi32>
    %140 = arith.sitofp %139 : vector<1x1600xi32> to vector<1x1600xf32>
    %141 = vector.broadcast %140 : vector<1x1600xf32> to vector<32x1600xf32>
    %142 = arith.mulf %127, %141 : vector<32x1600xf32>
    %c64_90 = arith.constant 64 : index
    %c0_91 = arith.constant 0 : index
    %143 = vector.load %arg1[%c64_90, %c0_91] : memref<112x33xf32, #tpu.memory_space<vmem>>, vector<43x32xf32>
    %144 = arith.truncf %143 : vector<43x32xf32> to vector<43x32xbf16>
    %c64_92 = arith.constant 64 : index
    %c32_93 = arith.constant 32 : index
    %145 = vector.load %arg1[%c64_92, %c32_93] : memref<112x33xf32, #tpu.memory_space<vmem>>, vector<43x1xf32>
    %146 = arith.truncf %142 : vector<32x1600xf32> to vector<32x1600xbf16>
    %cst_94 = arith.constant dense<0.000000e+00> : vector<43x1600xf32>
    %147 = tpu.matmul %144, %146, %cst_94 {dimension_numbers = #tpu.dot_dimension_numbers<[1], [0], [0], [1], [0, 0, 1, 1], [], []>} : vector<43x32xbf16>, vector<32x1600xbf16>, vector<43x1600xf32> -> vector<43x1600xf32>
    %148 = vector.broadcast %145 : vector<43x1xf32> to vector<43x1600xf32>
    %149 = arith.addf %147, %148 : vector<43x1600xf32>
    %150 = math.tanh %149 : vector<43x1600xf32>
    %c0_95 = arith.constant 0 : index
    %c0_96 = arith.constant 0 : index
    %151 = vector.load %arg2[%c0_95, %c0_96] : memref<43x1600xf32, #tpu.memory_space<vmem>>, vector<43x1600xf32>
    tpu.vector_store %arg2[%c0_95, %c0_96], %150 {strides = array<i32>} : memref<43x1600xf32, #tpu.memory_space<vmem>>, vector<43x1600xf32>,
    return
  }
}

</mosaic_0001>

<llo_original>
// kernel: model_forward.1
$region0: #{model_forward.1}
  #allocation0 [shape = 'u32[]', space=smem, size = 0x4, offset = 0x4, fixed_abs, tag = 'smem constant byte address 0x4 - core index']
  #allocation1 [shape = 'u32[144,128]{1,0:T(1,128)}', space=vmem, size = 0x12000, scoped, tag = 'internal scratch']
  #allocation2 [shape = 'f32[3,1600]{1,0:T(4,128)}', space=vmem, size = 0x6800, scoped, tag = 'scratch operand']
  %s0 = inlined_call_operand.vmem [shape: f32[3,1024], index: 0, kind: input, shape index: {}]
  %s1 = inlined_call_operand.vmem [shape: f32[112,33], index: 1, kind: input, shape index: {}]
  %s2 = inlined_call_operand.vmem [shape: f32[43,1600], index: 2, kind: output, shape index: {}]
  %s3 = sld [smem:[#allocation0]]
  $region18: #{model_forward.1} parent=0
    _
  %s5 = ssub.s32 1, %s3
  %s6 = scalar_select 0, %s5, %s3
  // Predicated region
  $region2: #{model_forward.1} parent=0 // pred_check
    _
  $region3: #{model_forward.1} parent=0 // pred_check_branch
    %8 = sbr.rel (0) target = $region5
  $region4: #{model_forward.1} parent=0 // pred_region
    _
  $region5: #{model_forward.1} parent=0 // pred_fallthru
    _
  // Predicated region
  $region6: #{model_forward.1} parent=0 // pred_check
    _
  $region7: #{model_forward.1} parent=0 // pred_check_branch
    %10 = sbr.rel (0) target = $region9
  $region8: #{model_forward.1} parent=0 // pred_region
    _
  $region9: #{model_forward.1} parent=0 // pred_fallthru
    _
  %12 = vst [vmem:[#allocation2] sm:$0x77] 0.0
  %13 = vst [vmem:[#allocation2 + $0x8] sm:$0x77] 0.0
  %14 = vst [vmem:[#allocation2 + $0x10] sm:$0x77] 0.0
  %15 = vst [vmem:[#allocation2 + $0x18] sm:$0x77] 0.0
  %16 = vst [vmem:[#allocation2 + $0x20] sm:$0x77] 0.0
  %17 = vst [vmem:[#allocation2 + $0x28] sm:$0x77] 0.0
  %vm18 = vcmask 518144
  %19 = vst.msk [vmem:[#allocation2 + $0x30] sm:$0x7] %vm18, 0.0
  %v20 = vld [vmem:[%s0] sm:$0x7]
  %22 = vrot.lane.b32.xlu0 %v20, 36
  %v23 = vpop.permute.xlu0 %22
  %vm25 = vcmask 551200
  %26 = vst.msk [vmem:[#allocation2 + $0x4] sm:$0x7] %vm25, %v23
  %v27 = vld [vmem:[%s0] sm:$0x7]
  %29 = vrot.lane.b32.xlu0 %v27, 44
  %v30 = vpop.permute.xlu0 %29
  %vm32 = vcmask 879200
  %33 = vst.msk [vmem:[#allocation2 + $0x4] sm:$0x7] %vm32, %v30
  %v34 = vld [vmem:[%s0] sm:$0x7]
  %36 = vrot.lane.b32.xlu0 %v34, 52
  %v37 = vpop.permute.xlu0 %36
  %v38 = vrot.slane %v37, 4
  %vm39 = vcmask 424960
  %v40 = vsel %vm39, %v38, %v37
  %vm42 = vcmask 1043360
  %vm43 = vcmask 161796
  %vm44 = vmor %vm43, %vm42
  %45 = vst.msk [vmem:[#allocation2 + $0x4] sm:$0x77] %vm44, %v40
  %v46 = vld [vmem:[%s0] sm:$0x7]
  %48 = vrot.lane.b32.xlu0 %v46, 60
  %v49 = vpop.permute.xlu0 %48
  %vm51 = vcmask 485600
  %52 = vst.msk [vmem:[#allocation2 + $0x8] sm:$0x7] %vm51, %v49
  %v53 = vld [vmem:[%s0 + $0x4] sm:$0x7]
  %55 = vrot.lane.b32.xlu0 %v53, 68
  %v56 = vpop.permute.xlu0 %55
  %vm58 = vcmask 813600
  %59 = vst.msk [vmem:[#allocation2 + $0x8] sm:$0x7] %vm58, %v56
  %v60 = vld [vmem:[%s0 + $0x4] sm:$0x7]
  %62 = vrot.lane.b32.xlu0 %v60, 76
  %v63 = vpop.permute.xlu0 %62
  %v64 = vrot.slane %v63, 4
  %vm65 = vcmask 621568
  %v66 = vsel %vm65, %v64, %v63
  %vm68 = vcmask 1043296
  %vm69 = vcmask 96260
  %vm70 = vmor %vm69, %vm68
  %71 = vst.msk [vmem:[#allocation2 + $0x8] sm:$0x77] %vm70, %v66
  %v72 = vld [vmem:[%s0 + $0x4] sm:$0x7]
  %74 = vrot.lane.b32.xlu0 %v72, 84
  %v75 = vpop.permute.xlu0 %74
  %vm77 = vcmask 420000
  %78 = vst.msk [vmem:[#allocation2 + $0xc] sm:$0x7] %vm77, %v75
  %v79 = vld [vmem:[%s0 + $0x4] sm:$0x7]
  %81 = vrot.lane.b32.xlu0 %v79, 92
  %v82 = vpop.permute.xlu0 %81
  %vm84 = vcmask 748000
  %85 = vst.msk [vmem:[#allocation2 + $0xc] sm:$0x7] %vm84, %v82
  %v86 = vld [vmem:[%s0 + $0x8] sm:$0x7]
  %88 = vrot.lane.b32.xlu0 %v86, 100
  %v89 = vpop.permute.xlu0 %88
  %v90 = vrot.slane %v89, 4
  %vm91 = vcmask 818176
  %v92 = vsel %vm91, %v90, %v89
  %vm94 = vcmask 1043232
  %vm95 = vcmask 30724
  %vm96 = vmor %vm95, %vm94
  %97 = vst.msk [vmem:[#allocation2 + $0xc] sm:$0x77] %vm96, %v92
  %v98 = vld [vmem:[%s0 + $0x8] sm:$0x7]
  %100 = vrot.lane.b32.xlu0 %v98, 108
  %v101 = vpop.permute.xlu0 %100
  %vm103 = vcmask 354400
  %104 = vst.msk [vmem:[#allocation2 + $0x10] sm:$0x7] %vm103, %v101
  %v105 = vld [vmem:[%s0 + $0x8] sm:$0x7]
  %107 = vrot.lane.b32.xlu0 %v105, 116
  %v108 = vpop.permute.xlu0 %107
  %vm110 = vcmask 682400
  %111 = vst.msk [vmem:[#allocation2 + $0x10] sm:$0x7] %vm110, %v108
  %v112 = vld [vmem:[%s0 + $0x8] sm:$0x7]
  %114 = vrot.lane.b32.xlu0 %v112, 124
  %v115 = vpop.permute.xlu0 %114
  %vm117 = vcmask 1010400
  %118 = vst.msk [vmem:[#allocation2 + $0x10] sm:$0x7] %vm117, %v115
  %v119 = vld [vmem:[%s0 + $0xc] sm:$0x7]
  %121 = vrot.lane.b32.xlu0 %v119, 4
  %v122 = vpop.permute.xlu0 %121
  %vm124 = vcmask 288800
  %125 = vst.msk [vmem:[#allocation2 + $0x14] sm:$0x7] %vm124, %v122
  %v126 = vld [vmem:[%s0 + $0xc] sm:$0x7]
  %128 = vrot.lane.b32.xlu0 %v126, 12
  %v129 = vpop.permute.xlu0 %128
  %vm131 = vcmask 616800
  %132 = vst.msk [vmem:[#allocation2 + $0x14] sm:$0x7] %vm131, %v129
  %v133 = vld [vmem:[%s0 + $0xc] sm:$0x7]
  %135 = vrot.lane.b32.xlu0 %v133, 20
  %v136 = vpop.permute.xlu0 %135
  %vm138 = vcmask 944800
  %139 = vst.msk [vmem:[#allocation2 + $0x14] sm:$0x7] %vm138, %v136
  %v140 = vld [vmem:[%s0 + $0xc] sm:$0x7]
  %142 = vrot.lane.b32.xlu0 %v140, 28
  %v143 = vpop.permute.xlu0 %142
  %v144 = vrot.slane %v143, 4
  %vm145 = vcmask 228352
  %v146 = vsel %vm145, %v144, %v143
  %vm148 = vcmask 1043424
  %vm149 = vcmask 227332
  %vm150 = vmor %vm149, %vm148
  %151 = vst.msk [vmem:[#allocation2 + $0x14] sm:$0x77] %vm150, %v146
  %v152 = vld [vmem:[%s0 + $0x10] sm:$0x7]
  %154 = vrot.lane.b32.xlu0 %v152, 36
  %v155 = vpop.permute.xlu0 %154
  %157 = vst.msk [vmem:[#allocation2 + $0x18] sm:$0x7] %vm25, %v155
  %v158 = vld [vmem:[%s0 + $0x10] sm:$0x7]
  %160 = vrot.lane.b32.xlu0 %v158, 44
  %v161 = vpop.permute.xlu0 %160
  %163 = vst.msk [vmem:[#allocation2 + $0x18] sm:$0x7] %vm32, %v161
  %v164 = vld [vmem:[%s0 + $0x10] sm:$0x7]
  %166 = vrot.lane.b32.xlu0 %v164, 52
  %v167 = vpop.permute.xlu0 %166
  %v168 = vrot.slane %v167, 4
  %v169 = vsel %vm39, %v168, %v167
  %171 = vst.msk [vmem:[#allocation2 + $0x18] sm:$0x77] %vm44, %v169
  %v172 = vld [vmem:[%s0 + $0x10] sm:$0x7]
  %174 = vrot.lane.b32.xlu0 %v172, 60
  %v175 = vpop.permute.xlu0 %174
  %177 = vst.msk [vmem:[#allocation2 + $0x1c] sm:$0x7] %vm51, %v175
  %v178 = vld [vmem:[%s0 + $0x14] sm:$0x7]
  %180 = vrot.lane.b32.xlu0 %v178, 68
  %v181 = vpop.permute.xlu0 %180
  %183 = vst.msk [vmem:[#allocation2 + $0x1c] sm:$0x7] %vm58, %v181
  %v184 = vld [vmem:[%s0 + $0x14] sm:$0x7]
  %186 = vrot.lane.b32.xlu0 %v184, 76
  %v187 = vpop.permute.xlu0 %186
  %v188 = vrot.slane %v187, 4
  %v189 = vsel %vm65, %v188, %v187
  %191 = vst.msk [vmem:[#allocation2 + $0x1c] sm:$0x77] %vm70, %v189
  %v192 = vld [vmem:[%s0 + $0x14] sm:$0x7]
  %194 = vrot.lane.b32.xlu0 %v192, 84
  %v195 = vpop.permute.xlu0 %194
  %197 = vst.msk [vmem:[#allocation2 + $0x20] sm:$0x7] %vm77, %v195
  %v198 = vld [vmem:[%s0 + $0x14] sm:$0x7]
  %200 = vrot.lane.b32.xlu0 %v198, 92
  %v201 = vpop.permute.xlu0 %200
  %203 = vst.msk [vmem:[#allocation2 + $0x20] sm:$0x7] %vm84, %v201
  %v204 = vld [vmem:[%s0 + $0x18] sm:$0x7]
  %206 = vrot.lane.b32.xlu0 %v204, 100
  %v207 = vpop.permute.xlu0 %206
  %v208 = vrot.slane %v207, 4
  %v209 = vsel %vm91, %v208, %v207
  %211 = vst.msk [vmem:[#allocation2 + $0x20] sm:$0x77] %vm96, %v209
  %v212 = vld [vmem:[%s0 + $0x18] sm:$0x7]
  %214 = vrot.lane.b32.xlu0 %v212, 108
  %v215 = vpop.permute.xlu0 %214
  %217 = vst.msk [vmem:[#allocation2 + $0x24] sm:$0x7] %vm103, %v215
  %v218 = vld [vmem:[%s0 + $0x18] sm:$0x7]
  %220 = vrot.lane.b32.xlu0 %v218, 116
  %v221 = vpop.permute.xlu0 %220
  %223 = vst.msk [vmem:[#allocation2 + $0x24] sm:$0x7] %vm110, %v221
  %v224 = vld [vmem:[%s0 + $0x18] sm:$0x7]
  %226 = vrot.lane.b32.xlu0 %v224, 124
  %v227 = vpop.permute.xlu0 %226
  %229 = vst.msk [vmem:[#allocation2 + $0x24] sm:$0x7] %vm117, %v227
  %v230 = vld [vmem:[%s0 + $0x1c] sm:$0x7]
  %232 = vrot.lane.b32.xlu0 %v230, 4
  %v233 = vpop.permute.xlu0 %232
  %235 = vst.msk [vmem:[#allocation2 + $0x28] sm:$0x7] %vm124, %v233
  %v236 = vld [vmem:[%s0 + $0x1c] sm:$0x7]
  %238 = vrot.lane.b32.xlu0 %v236, 12
  %v239 = vpop.permute.xlu0 %238
  %241 = vst.msk [vmem:[#allocation2 + $0x28] sm:$0x7] %vm131, %v239
  %v242 = vld [vmem:[%s0 + $0x1c] sm:$0x7]
  %244 = vrot.lane.b32.xlu0 %v242, 20
  %v245 = vpop.permute.xlu0 %244
  %247 = vst.msk [vmem:[#allocation2 + $0x28] sm:$0x7] %vm138, %v245
  %v248 = vld [vmem:[%s0 + $0x1c] sm:$0x7]
  %250 = vrot.lane.b32.xlu0 %v248, 28
  %v251 = vpop.permute.xlu0 %250
  %v252 = vrot.slane %v251, 4
  %v253 = vsel %vm145, %v252, %v251
  %255 = vst.msk [vmem:[#allocation2 + $0x28] sm:$0x77] %vm150, %v253
  %v256 = vld [vmem:[#allocation2] sm:$0x77]
  %v257 = vld [vmem:[#allocation2 + $0x8] sm:$0x77]
  %v258 = vld [vmem:[#allocation2 + $0x10] sm:$0x77]
  %v259 = vld [vmem:[#allocation2 + $0x18] sm:$0x77]
  %v260 = vld [vmem:[#allocation2 + $0x20] sm:$0x77]
  %v261 = vld [vmem:[#allocation2 + $0x28] sm:$0x77]
  %v262 = vld [vmem:[#allocation2 + $0x30] sm:$0x7]
  %v263 = vlaneseq
  %v264 = vand.u32 %v263, 127
  %v265 = vadd.s32 %v264, 128
  %v266 = vadd.s32 %v264, 256
  %v267 = vadd.s32 %v264, 384
  %v268 = vadd.s32 %v264, 512
  %v269 = vadd.s32 %v264, 640
  %v270 = vadd.s32 %v264, 768
  %v271 = vadd.s32 %v264, 896
  %v272 = vadd.s32 %v264, 1024
  %v273 = vadd.s32 %v264, 1152
  %v274 = vadd.s32 %v264, 1280
  %v275 = vadd.s32 %v264, 1408
  %v276 = vadd.s32 %v264, 1536
  %v277 = vcvt.s32.f32 %v264
  %v278 = vcvt.s32.f32 %v265
  %v279 = vcvt.s32.f32 %v266
  %v280 = vcvt.s32.f32 %v267
  %v281 = vcvt.s32.f32 %v268
  %v282 = vcvt.s32.f32 %v269
  %v283 = vcvt.s32.f32 %v270
  %v284 = vcvt.s32.f32 %v271
  %v285 = vcvt.s32.f32 %v272
  %v286 = vcvt.s32.f32 %v273
  %v287 = vcvt.s32.f32 %v274
  %v288 = vcvt.s32.f32 %v275
  %v289 = vcvt.s32.f32 %v276
  %v290 = vadd.f32 %v277, 0.5
  %v291 = vadd.f32 %v278, 0.5
  %v292 = vadd.f32 %v279, 0.5
  %v293 = vadd.f32 %v280, 0.5
  %v294 = vadd.f32 %v281, 0.5
  %v295 = vadd.f32 %v282, 0.5
  %v296 = vadd.f32 %v283, 0.5
  %v297 = vadd.f32 %v284, 0.5
  %v298 = vadd.f32 %v285, 0.5
  %v299 = vadd.f32 %v286, 0.5
  %v300 = vadd.f32 %v287, 0.5
  %v301 = vadd.f32 %v288, 0.5
  %v302 = vadd.f32 %v289, 0.5
  %v303 = vmul.f32 %v290, 0.025
  %v304 = vmul.f32 %v291, 0.025
  %v305 = vmul.f32 %v292, 0.025
  %v306 = vmul.f32 %v293, 0.025
  %v307 = vmul.f32 %v294, 0.025
  %v308 = vmul.f32 %v295, 0.025
  %v309 = vmul.f32 %v296, 0.025
  %v310 = vmul.f32 %v297, 0.025
  %v311 = vmul.f32 %v298, 0.025
  %v312 = vmul.f32 %v299, 0.025
  %v313 = vmul.f32 %v300, 0.025
  %v314 = vmul.f32 %v301, 0.025
  %v315 = vmul.f32 %v302, 0.025
  %v316 = vcvt.f32.s32.to.zero.pseudo %v303
  %v317 = vcvt.f32.s32.to.zero.pseudo %v304
  %v318 = vcvt.f32.s32.to.zero.pseudo %v305
  %v319 = vcvt.f32.s32.to.zero.pseudo %v306
  %v320 = vcvt.f32.s32.to.zero.pseudo %v307
  %v321 = vcvt.f32.s32.to.zero.pseudo %v308
  %v322 = vcvt.f32.s32.to.zero.pseudo %v309
  %v323 = vcvt.f32.s32.to.zero.pseudo %v310
  %v324 = vcvt.f32.s32.to.zero.pseudo %v311
  %v325 = vcvt.f32.s32.to.zero.pseudo %v312
  %v326 = vcvt.f32.s32.to.zero.pseudo %v313
  %v327 = vcvt.f32.s32.to.zero.pseudo %v314
  %v328 = vcvt.f32.s32.to.zero.pseudo %v315
  %v329 = vmul.u32 %v316, 40
  %v330 = vmul.u32 %v317, 40
  %v331 = vmul.u32 %v318, 40
  %v332 = vmul.u32 %v319, 40
  %v333 = vmul.u32 %v320, 40
  %v334 = vmul.u32 %v321, 40
  %v335 = vmul.u32 %v322, 40
  %v336 = vmul.u32 %v323, 40
  %v337 = vmul.u32 %v324, 40
  %v338 = vmul.u32 %v325, 40
  %v339 = vmul.u32 %v326, 40
  %v340 = vmul.u32 %v327, 40
  %v341 = vmul.u32 %v328, 40
  %v342 = vsub.s32 %v264, %v329
  %v343 = vsub.s32 %v265, %v330
  %v344 = vsub.s32 %v266, %v331
  %v345 = vsub.s32 %v267, %v332
  %v346 = vsub.s32 %v268, %v333
  %v347 = vsub.s32 %v269, %v334
  %v348 = vsub.s32 %v270, %v335
  %v349 = vsub.s32 %v271, %v336
  %v350 = vsub.s32 %v272, %v337
  %v351 = vsub.s32 %v273, %v338
  %v352 = vsub.s32 %v274, %v339
  %v353 = vsub.s32 %v275, %v340
  %v354 = vsub.s32 %v276, %v341
  %v355 = vld [vmem:[%s1] sm:$0xff]
  %v356 = vpack.c.bf16 %v355, %v355
  %v363 = vcombine.high %v256, %v256
  %v364 = vcombine.high %v257, %v257
  %v365 = vcombine.high %v258, %v258
  %v366 = vcombine.high %v259, %v259
  %v367 = vcombine.high %v260, %v260
  %v368 = vcombine.high %v261, %v261
  %v375 = vpack.c.bf16 %v256, %v256
  %v376 = vpack.c.bf16 %v363, %v363
  %v377 = vpack.c.bf16 %v257, %v257
  %v378 = vpack.c.bf16 %v364, %v364
  %v379 = vpack.c.bf16 %v258, %v258
  %v380 = vpack.c.bf16 %v365, %v365
  %v381 = vpack.c.bf16 %v259, %v259
  %v382 = vpack.c.bf16 %v366, %v366
  %v383 = vpack.c.bf16 %v260, %v260
  %v384 = vpack.c.bf16 %v367, %v367
  %v385 = vpack.c.bf16 %v261, %v261
  %v386 = vpack.c.bf16 %v368, %v368
  %v387 = vpack.c.bf16 %v262, %v262
  %389 = vset.pattern.permute.xlu0 32
  %390 = vperm.xlu0 %389, %v355
  %v391 = vpop.permute.xlu0 %390
  %vm393 = vcmask 23552
  %v395 = vsel %vm393, %v356, 0
  %vm397 = vcmask 1040384
  %vm398 = vcmask 1041408
  %v399 = vsel %vm397, 4294967295, 65535
  %v400 = vsel %vm398, %v399, 0
  %v402 = vand.u32 %v375, %v400
  %v405 = vand.u32 %v376, %v400
  %v408 = vand.u32 %v377, %v400
  %v411 = vand.u32 %v378, %v400
  %v414 = vand.u32 %v379, %v400
  %v417 = vand.u32 %v380, %v400
  %v420 = vand.u32 %v381, %v400
  %v423 = vand.u32 %v382, %v400
  %v426 = vand.u32 %v383, %v400
  %v429 = vand.u32 %v384, %v400
  %v432 = vand.u32 %v385, %v400
  %v435 = vand.u32 %v386, %v400
  %v438 = vand.u32 %v387, %v400
  %440 = vmatprep.subr.bf16.mxu0 0
  %441 = vmatpush1.bf16.msra.mxu0 0
  %442 = vmatprep.subr.bf16.mxu0 0
  %443 = vmatpush1.bf16.msra.mxu0 0
  %444 = vmatprep.subr.bf16.mxu0 0
  %445 = vmatpush1.bf16.msra.mxu0 0
  %446 = vmatprep.subr.bf16.mxu0 0
  %447 = vmatpush1.bf16.msra.mxu0 0
  %448 = vmatprep.subr.bf16.mxu0 0
  %449 = vmatpush1.bf16.msra.mxu0 0
  %450 = vmatprep.subr.bf16.mxu0 0
  %451 = vmatpush1.bf16.msra.mxu0 0
  %452 = vmatprep.subr.bf16.mxu0 0
  %453 = vmatpush1.bf16.msra.mxu0 0
  %454 = vmatprep.subr.bf16.mxu0 %v405
  %455 = vmatpush1.bf16.msra.mxu0 %v402
  %456 = vmatprep.subr.bf16.mxu0 0
  %457 = vmatpush2.bf16.msra.mxu0 0
  %458 = vmatprep.subr.bf16.mxu0 0
  %459 = vmatpush2.bf16.msra.mxu0 0
  %460 = vmatprep.subr.bf16.mxu0 0
  %461 = vmatpush2.bf16.msra.mxu0 0
  %462 = vmatprep.subr.bf16.mxu0 0
  %463 = vmatpush2.bf16.msra.mxu0 0
  %464 = vmatprep.subr.bf16.mxu0 0
  %465 = vmatpush2.bf16.msra.mxu0 0
  %466 = vmatprep.subr.bf16.mxu0 0
  %467 = vmatpush2.bf16.msra.mxu0 0
  %468 = vmatprep.subr.bf16.mxu0 0
  %469 = vmatpush2.bf16.msra.mxu0 0
  %470 = vmatprep.subr.bf16.mxu0 0
  %471 = vmatpush2.bf16.msra.mxu0 0
  %472 = vmatprep.mubr.bf16.mxu0 0
  %473 = vmatmul.mubr.bf16.gmra.mxu0 %v395
  %v474 = vpop.f32.mrf.mxu0
  %v475 = vadd.f32 %v391, %v474
  %v476 = vpop.f32.mrf.mxu0
  %v477 = vadd.f32 %v391, %v476
  %v478 = vpop.f32.mrf.mxu0
  %v479 = vpop.f32.mrf.mxu0
  %480 = vdwg.mxu0
  %481 = vmatprep.subr.bf16.mxu0 0
  %482 = vmatpush1.bf16.msra.mxu0 0
  %483 = vmatprep.subr.bf16.mxu0 0
  %484 = vmatpush1.bf16.msra.mxu0 0
  %485 = vmatprep.subr.bf16.mxu0 0
  %486 = vmatpush1.bf16.msra.mxu0 0
  %487 = vmatprep.subr.bf16.mxu0 0
  %488 = vmatpush1.bf16.msra.mxu0 0
  %489 = vmatprep.subr.bf16.mxu0 0
  %490 = vmatpush1.bf16.msra.mxu0 0
  %491 = vmatprep.subr.bf16.mxu0 0
  %492 = vmatpush1.bf16.msra.mxu0 0
  %493 = vmatprep.subr.bf16.mxu0 0
  %494 = vmatpush1.bf16.msra.mxu0 0
  %495 = vmatprep.subr.bf16.mxu0 %v411
  %496 = vmatpush1.bf16.msra.mxu0 %v408
  %497 = vmatprep.subr.bf16.mxu0 0
  %498 = vmatpush2.bf16.msra.mxu0 0
  %499 = vmatprep.subr.bf16.mxu0 0
  %500 = vmatpush2.bf16.msra.mxu0 0
  %501 = vmatprep.subr.bf16.mxu0 0
  %502 = vmatpush2.bf16.msra.mxu0 0
  %503 = vmatprep.subr.bf16.mxu0 0
  %504 = vmatpush2.bf16.msra.mxu0 0
  %505 = vmatprep.subr.bf16.mxu0 0
  %506 = vmatpush2.bf16.msra.mxu0 0
  %507 = vmatprep.subr.bf16.mxu0 0
  %508 = vmatpush2.bf16.msra.mxu0 0
  %509 = vmatprep.subr.bf16.mxu0 0
  %510 = vmatpush2.bf16.msra.mxu0 0
  %511 = vmatprep.subr.bf16.mxu0 0
  %512 = vmatpush2.bf16.msra.mxu0 0
  %513 = vmatprep.mubr.bf16.mxu0 0
  %514 = vmatmul.mubr.bf16.gmra.mxu0 %v395
  %v515 = vpop.f32.mrf.mxu0
  %v516 = vadd.f32 %v391, %v515
  %v517 = vpop.f32.mrf.mxu0
  %v518 = vadd.f32 %v391, %v517
  %v519 = vpop.f32.mrf.mxu0
  %v520 = vpop.f32.mrf.mxu0
  %521 = vdwg.mxu0
  %522 = vmatprep.subr.bf16.mxu0 0
  %523 = vmatpush1.bf16.msra.mxu0 0
  %524 = vmatprep.subr.bf16.mxu0 0
  %525 = vmatpush1.bf16.msra.mxu0 0
  %526 = vmatprep.subr.bf16.mxu0 0
  %527 = vmatpush1.bf16.msra.mxu0 0
  %528 = vmatprep.subr.bf16.mxu0 0
  %529 = vmatpush1.bf16.msra.mxu0 0
  %530 = vmatprep.subr.bf16.mxu0 0
  %531 = vmatpush1.bf16.msra.mxu0 0
  %532 = vmatprep.subr.bf16.mxu0 0
  %533 = vmatpush1.bf16.msra.mxu0 0
  %534 = vmatprep.subr.bf16.mxu0 0
  %535 = vmatpush1.bf16.msra.mxu0 0
  %536 = vmatprep.subr.bf16.mxu0 %v417
  %537 = vmatpush1.bf16.msra.mxu0 %v414
  %538 = vmatprep.subr.bf16.mxu0 0
  %539 = vmatpush2.bf16.msra.mxu0 0
  %540 = vmatprep.subr.bf16.mxu0 0
  %541 = vmatpush2.bf16.msra.mxu0 0
  %542 = vmatprep.subr.bf16.mxu0 0
  %543 = vmatpush2.bf16.msra.mxu0 0
  %544 = vmatprep.subr.bf16.mxu0 0
  %545 = vmatpush2.bf16.msra.mxu0 0
  %546 = vmatprep.subr.bf16.mxu0 0
  %547 = vmatpush2.bf16.msra.mxu0 0
  %548 = vmatprep.subr.bf16.mxu0 0
  %549 = vmatpush2.bf16.msra.mxu0 0
  %550 = vmatprep.subr.bf16.mxu0 0
  %551 = vmatpush2.bf16.msra.mxu0 0
  %552 = vmatprep.subr.bf16.mxu0 0
  %553 = vmatpush2.bf16.msra.mxu0 0
  %554 = vmatprep.mubr.bf16.mxu0 0
  %555 = vmatmul.mubr.bf16.gmra.mxu0 %v395
  %v556 = vpop.f32.mrf.mxu0
  %v557 = vadd.f32 %v391, %v556
  %v558 = vpop.f32.mrf.mxu0
  %v559 = vadd.f32 %v391, %v558
  %v560 = vpop.f32.mrf.mxu0
  %v561 = vpop.f32.mrf.mxu0
  %562 = vdwg.mxu0
  %563 = vmatprep.subr.bf16.mxu0 0
  %564 = vmatpush1.bf16.msra.mxu0 0
  %565 = vmatprep.subr.bf16.mxu0 0
  %566 = vmatpush1.bf16.msra.mxu0 0
  %567 = vmatprep.subr.bf16.mxu0 0
  %568 = vmatpush1.bf16.msra.mxu0 0
  %569 = vmatprep.subr.bf16.mxu0 0
  %570 = vmatpush1.bf16.msra.mxu0 0
  %571 = vmatprep.subr.bf16.mxu0 0
  %572 = vmatpush1.bf16.msra.mxu0 0
  %573 = vmatprep.subr.bf16.mxu0 0
  %574 = vmatpush1.bf16.msra.mxu0 0
  %575 = vmatprep.subr.bf16.mxu0 0
  %576 = vmatpush1.bf16.msra.mxu0 0
  %577 = vmatprep.subr.bf16.mxu0 %v423
  %578 = vmatpush1.bf16.msra.mxu0 %v420
  %579 = vmatprep.subr.bf16.mxu0 0
  %580 = vmatpush2.bf16.msra.mxu0 0
  %581 = vmatprep.subr.bf16.mxu0 0
  %582 = vmatpush2.bf16.msra.mxu0 0
  %583 = vmatprep.subr.bf16.mxu0 0
  %584 = vmatpush2.bf16.msra.mxu0 0
  %585 = vmatprep.subr.bf16.mxu0 0
  %586 = vmatpush2.bf16.msra.mxu0 0
  %587 = vmatprep.subr.bf16.mxu0 0
  %588 = vmatpush2.bf16.msra.mxu0 0
  %589 = vmatprep.subr.bf16.mxu0 0
  %590 = vmatpush2.bf16.msra.mxu0 0
  %591 = vmatprep.subr.bf16.mxu0 0
  %592 = vmatpush2.bf16.msra.mxu0 0
  %593 = vmatprep.subr.bf16.mxu0 0
  %594 = vmatpush2.bf16.msra.mxu0 0
  %595 = vmatprep.mubr.bf16.mxu0 0
  %596 = vmatmul.mubr.bf16.gmra.mxu0 %v395
  %v597 = vpop.f32.mrf.mxu0
  %v598 = vadd.f32 %v391, %v597
  %v599 = vpop.f32.mrf.mxu0
  %v600 = vadd.f32 %v391, %v599
  %v601 = vpop.f32.mrf.mxu0
  %v602 = vpop.f32.mrf.mxu0
  %603 = vdwg.mxu0
  %604 = vmatprep.subr.bf16.mxu0 0
  %605 = vmatpush1.bf16.msra.mxu0 0
  %606 = vmatprep.subr.bf16.mxu0 0
  %607 = vmatpush1.bf16.msra.mxu0 0
  %608 = vmatprep.subr.bf16.mxu0 0
  %609 = vmatpush1.bf16.msra.mxu0 0
  %610 = vmatprep.subr.bf16.mxu0 0
  %611 = vmatpush1.bf16.msra.mxu0 0
  %612 = vmatprep.subr.bf16.mxu0 0
  %613 = vmatpush1.bf16.msra.mxu0 0
  %614 = vmatprep.subr.bf16.mxu0 0
  %615 = vmatpush1.bf16.msra.mxu0 0
  %616 = vmatprep.subr.bf16.mxu0 0
  %617 = vmatpush1.bf16.msra.mxu0 0
  %618 = vmatprep.subr.bf16.mxu0 %v429
  %619 = vmatpush1.bf16.msra.mxu0 %v426
  %620 = vmatprep.subr.bf16.mxu0 0
  %621 = vmatpush2.bf16.msra.mxu0 0
  %622 = vmatprep.subr.bf16.mxu0 0
  %623 = vmatpush2.bf16.msra.mxu0 0
  %624 = vmatprep.subr.bf16.mxu0 0
  %625 = vmatpush2.bf16.msra.mxu0 0
  %626 = vmatprep.subr.bf16.mxu0 0
  %627 = vmatpush2.bf16.msra.mxu0 0
  %628 = vmatprep.subr.bf16.mxu0 0
  %629 = vmatpush2.bf16.msra.mxu0 0
  %630 = vmatprep.subr.bf16.mxu0 0
  %631 = vmatpush2.bf16.msra.mxu0 0
  %632 = vmatprep.subr.bf16.mxu0 0
  %633 = vmatpush2.bf16.msra.mxu0 0
  %634 = vmatprep.subr.bf16.mxu0 0
  %635 = vmatpush2.bf16.msra.mxu0 0
  %636 = vmatprep.mubr.bf16.mxu0 0
  %637 = vmatmul.mubr.bf16.gmra.mxu0 %v395
  %v638 = vpop.f32.mrf.mxu0
  %v639 = vadd.f32 %v391, %v638
  %v640 = vpop.f32.mrf.mxu0
  %v641 = vadd.f32 %v391, %v640
  %v642 = vpop.f32.mrf.mxu0
  %v643 = vpop.f32.mrf.mxu0
  %644 = vdwg.mxu0
  %645 = vmatprep.subr.bf16.mxu0 0
  %646 = vmatpush1.bf16.msra.mxu0 0
  %647 = vmatprep.subr.bf16.mxu0 0
  %648 = vmatpush1.bf16.msra.mxu0 0
  %649 = vmatprep.subr.bf16.mxu0 0
  %650 = vmatpush1.bf16.msra.mxu0 0
  %651 = vmatprep.subr.bf16.mxu0 0
  %652 = vmatpush1.bf16.msra.mxu0 0
  %653 = vmatprep.subr.bf16.mxu0 0
  %654 = vmatpush1.bf16.msra.mxu0 0
  %655 = vmatprep.subr.bf16.mxu0 0
  %656 = vmatpush1.bf16.msra.mxu0 0
  %657 = vmatprep.subr.bf16.mxu0 0
  %658 = vmatpush1.bf16.msra.mxu0 0
  %659 = vmatprep.subr.bf16.mxu0 %v435
  %660 = vmatpush1.bf16.msra.mxu0 %v432
  %661 = vmatprep.subr.bf16.mxu0 0
  %662 = vmatpush2.bf16.msra.mxu0 0
  %663 = vmatprep.subr.bf16.mxu0 0
  %664 = vmatpush2.bf16.msra.mxu0 0
  %665 = vmatprep.subr.bf16.mxu0 0
  %666 = vmatpush2.bf16.msra.mxu0 0
  %667 = vmatprep.subr.bf16.mxu0 0
  %668 = vmatpush2.bf16.msra.mxu0 0
  %669 = vmatprep.subr.bf16.mxu0 0
  %670 = vmatpush2.bf16.msra.mxu0 0
  %671 = vmatprep.subr.bf16.mxu0 0
  %672 = vmatpush2.bf16.msra.mxu0 0
  %673 = vmatprep.subr.bf16.mxu0 0
  %674 = vmatpush2.bf16.msra.mxu0 0
  %675 = vmatprep.subr.bf16.mxu0 0
  %676 = vmatpush2.bf16.msra.mxu0 0
  %677 = vmatprep.mubr.bf16.mxu0 0
  %678 = vmatmul.mubr.bf16.gmra.mxu0 %v395
  %v679 = vpop.f32.mrf.mxu0
  %v680 = vadd.f32 %v391, %v679
  %v681 = vpop.f32.mrf.mxu0
  %v682 = vadd.f32 %v391, %v681
  %v683 = vpop.f32.mrf.mxu0
  %v684 = vpop.f32.mrf.mxu0
  %685 = vdwg.mxu0
  %686 = vmatprep.subr.bf16.mxu0 0
  %687 = vmatpush1.bf16.msra.mxu0 0
  %688 = vmatprep.subr.bf16.mxu0 0
  %689 = vmatpush1.bf16.msra.mxu0 0
  %690 = vmatprep.subr.bf16.mxu0 0
  %691 = vmatpush1.bf16.msra.mxu0 0
  %692 = vmatprep.subr.bf16.mxu0 0
  %693 = vmatpush1.bf16.msra.mxu0 0
  %694 = vmatprep.subr.bf16.mxu0 0
  %695 = vmatpush1.bf16.msra.mxu0 0
  %696 = vmatprep.subr.bf16.mxu0 0
  %697 = vmatpush1.bf16.msra.mxu0 0
  %698 = vmatprep.subr.bf16.mxu0 0
  %699 = vmatpush1.bf16.msra.mxu0 0
  %700 = vmatprep.subr.bf16.mxu0 0
  %701 = vmatpush1.bf16.msra.mxu0 %v438
  %702 = vmatprep.subr.bf16.mxu0 0
  %703 = vmatpush2.bf16.msra.mxu0 0
  %704 = vmatprep.subr.bf16.mxu0 0
  %705 = vmatpush2.bf16.msra.mxu0 0
  %706 = vmatprep.subr.bf16.mxu0 0
  %707 = vmatpush2.bf16.msra.mxu0 0
  %708 = vmatprep.subr.bf16.mxu0 0
  %709 = vmatpush2.bf16.msra.mxu0 0
  %710 = vmatprep.subr.bf16.mxu0 0
  %711 = vmatpush2.bf16.msra.mxu0 0
  %712 = vmatprep.subr.bf16.mxu0 0
  %713 = vmatpush2.bf16.msra.mxu0 0
  %714 = vmatprep.subr.bf16.mxu0 0
  %715 = vmatpush2.bf16.msra.mxu0 0
  %716 = vmatprep.subr.bf16.mxu0 0
  %717 = vmatpush2.bf16.msra.mxu0 0
  %718 = vmatprep.mubr.bf16.mxu0 0
  %719 = vmatmul.mubr.bf16.gmra.mxu0 %v395
  %v720 = vpop.f32.mrf.mxu0
  %v721 = vadd.f32 %v391, %v720
  %v722 = vpop.f32.mrf.mxu0
  %v723 = vpop.f32.mrf.mxu0
  %v724 = vpop.f32.mrf.mxu0
  %725 = vdwg.mxu0
  %vm726 = vcmp.ge.s32.totalorder %v316, 3
  %vm727 = vcmp.ge.s32.totalorder %v317, 3
  %vm728 = vcmp.ge.s32.totalorder %v318, 3
  %vm729 = vcmp.ge.s32.totalorder %v319, 3
  %vm730 = vcmp.ge.s32.totalorder %v320, 3
  %vm731 = vcmp.ge.s32.totalorder %v321, 3
  %vm732 = vcmp.ge.s32.totalorder %v322, 3
  %vm733 = vcmp.ge.s32.totalorder %v323, 3
  %vm734 = vcmp.ge.s32.totalorder %v324, 3
  %vm735 = vcmp.ge.s32.totalorder %v325, 3
  %vm736 = vcmp.ge.s32.totalorder %v326, 3
  %vm737 = vcmp.ge.s32.totalorder %v327, 3
  %vm738 = vcmp.ge.s32.totalorder %v328, 3
  %vm739 = vcmp.le.s32.totalorder %v316, 36
  %vm740 = vcmp.le.s32.totalorder %v317, 36
  %vm741 = vcmp.le.s32.totalorder %v318, 36
  %vm742 = vcmp.le.s32.totalorder %v319, 36
  %vm743 = vcmp.le.s32.totalorder %v320, 36
  %vm744 = vcmp.le.s32.totalorder %v321, 36
  %vm745 = vcmp.le.s32.totalorder %v322, 36
  %vm746 = vcmp.le.s32.totalorder %v323, 36
  %vm747 = vcmp.le.s32.totalorder %v324, 36
  %vm748 = vcmp.le.s32.totalorder %v325, 36
  %vm749 = vcmp.le.s32.totalorder %v326, 36
  %vm750 = vcmp.le.s32.totalorder %v327, 36
  %vm751 = vcmp.le.s32.totalorder %v328, 36
  %vm752 = vmand %vm726, %vm739
  %vm753 = vmand %vm727, %vm740
  %vm754 = vmand %vm728, %vm741
  %vm755 = vmand %vm729, %vm742
  %vm756 = vmand %vm730, %vm743
  %vm757 = vmand %vm731, %vm744
  %vm758 = vmand %vm732, %vm745
  %vm759 = vmand %vm733, %vm746
  %vm760 = vmand %vm734, %vm747
  %vm761 = vmand %vm735, %vm748
  %vm762 = vmand %vm736, %vm749
  %vm763 = vmand %vm737, %vm750
  %vm764 = vmand %vm738, %vm751
  %vm765 = vcmp.ge.s32.totalorder %v342, 3
  %vm766 = vcmp.ge.s32.totalorder %v343, 3
  %vm767 = vcmp.ge.s32.totalorder %v344, 3
  %vm768 = vcmp.ge.s32.totalorder %v345, 3
  %vm769 = vcmp.ge.s32.totalorder %v346, 3
  %vm770 = vcmp.ge.s32.totalorder %v347, 3
  %vm771 = vcmp.ge.s32.totalorder %v348, 3
  %vm772 = vcmp.ge.s32.totalorder %v349, 3
  %vm773 = vcmp.ge.s32.totalorder %v350, 3
  %vm774 = vcmp.ge.s32.totalorder %v351, 3
  %vm775 = vcmp.ge.s32.totalorder %v352, 3
  %vm776 = vcmp.ge.s32.totalorder %v353, 3
  %vm777 = vcmp.ge.s32.totalorder %v354, 3
  %vm778 = vmand %vm752, %vm765
  %vm779 = vmand %vm753, %vm766
  %vm780 = vmand %vm754, %vm767
  %vm781 = vmand %vm755, %vm768
  %vm782 = vmand %vm756, %vm769
  %vm783 = vmand %vm757, %vm770
  %vm784 = vmand %vm758, %vm771
  %vm785 = vmand %vm759, %vm772
  %vm786 = vmand %vm760, %vm773
  %vm787 = vmand %vm761, %vm774
  %vm788 = vmand %vm762, %vm775
  %vm789 = vmand %vm763, %vm776
  %vm790 = vmand %vm764, %vm777
  %vm791 = vcmp.le.s32.totalorder %v342, 36
  %vm792 = vcmp.le.s32.totalorder %v343, 36
  %vm793 = vcmp.le.s32.totalorder %v344, 36
  %vm794 = vcmp.le.s32.totalorder %v345, 36
  %vm795 = vcmp.le.s32.totalorder %v346, 36
  %vm796 = vcmp.le.s32.totalorder %v347, 36
  %vm797 = vcmp.le.s32.totalorder %v348, 36
  %vm798 = vcmp.le.s32.totalorder %v349, 36
  %vm799 = vcmp.le.s32.totalorder %v350, 36
  %vm800 = vcmp.le.s32.totalorder %v351, 36
  %vm801 = vcmp.le.s32.totalorder %v352, 36
  %vm802 = vcmp.le.s32.totalorder %v353, 36
  %vm803 = vcmp.le.s32.totalorder %v354, 36
  %vm804 = vmand %vm778, %vm791
  %vm805 = vmand %vm779, %vm792
  %vm806 = vmand %vm780, %vm793
  %vm807 = vmand %vm781, %vm794
  %vm808 = vmand %vm782, %vm795
  %vm809 = vmand %vm783, %vm796
  %vm810 = vmand %vm784, %vm797
  %vm811 = vmand %vm785, %vm798
  %vm812 = vmand %vm786, %vm799
  %vm813 = vmand %vm787, %vm800
  %vm814 = vmand %vm788, %vm801
  %vm815 = vmand %vm789, %vm802
  %vm816 = vmand %vm790, %vm803
  %v817 = vsel %vm804, 1, 0
  %v818 = vsel %vm805, 1, 0
  %v819 = vsel %vm806, 1, 0
  %v820 = vsel %vm807, 1, 0
  %v821 = vsel %vm808, 1, 0
  %v822 = vsel %vm809, 1, 0
  %v823 = vsel %vm810, 1, 0
  %v824 = vsel %vm811, 1, 0
  %v825 = vsel %vm812, 1, 0
  %v826 = vsel %vm813, 1, 0
  %v827 = vsel %vm814, 1, 0
  %v828 = vsel %vm815, 1, 0
  %v829 = vsel %vm816, 1, 0
  %v830 = vcvt.s32.f32 %v817
  %v831 = vcvt.s32.f32 %v818
  %v832 = vcvt.s32.f32 %v819
  %v833 = vcvt.s32.f32 %v820
  %v834 = vcvt.s32.f32 %v821
  %v835 = vcvt.s32.f32 %v822
  %v836 = vcvt.s32.f32 %v823
  %v837 = vcvt.s32.f32 %v824
  %v838 = vcvt.s32.f32 %v825
  %v839 = vcvt.s32.f32 %v826
  %v840 = vcvt.s32.f32 %v827
  %v841 = vcvt.s32.f32 %v828
  %v842 = vcvt.s32.f32 %v829
  %v843 = vmul.f32 %v475, %v830
  %v844 = vmul.f32 %v477, %v831
  %v845 = vmul.f32 %v516, %v832
  %v846 = vmul.f32 %v518, %v833
  %v847 = vmul.f32 %v557, %v834
  %v848 = vmul.f32 %v559, %v835
  %v849 = vmul.f32 %v598, %v836
  %v850 = vmul.f32 %v600, %v837
  %v851 = vmul.f32 %v639, %v838
  %v852 = vmul.f32 %v641, %v839
  %v853 = vmul.f32 %v680, %v840
  %v854 = vmul.f32 %v682, %v841
  %v855 = vmul.f32 %v721, %v842
  %v856 = vld [vmem:[%s1 + $0x8] sm:$0xff]
  %v857 = vld [vmem:[%s1 + $0x10] sm:$0xff]
  %v858 = vld [vmem:[%s1 + $0x18] sm:$0x3f]
  %v859 = vpack.c.bf16 %v857, %v856
  %v860 = vpack.c.bf16 %v858, %v858
  %v861 = vpack.c.bf16 %v843, %v843
  %v862 = vpack.c.bf16 %v844, %v844
  %v863 = vpack.c.bf16 %v845, %v845
  %v864 = vpack.c.bf16 %v846, %v846
  %v865 = vpack.c.bf16 %v847, %v847
  %v866 = vpack.c.bf16 %v848, %v848
  %v867 = vpack.c.bf16 %v849, %v849
  %v868 = vpack.c.bf16 %v850, %v850
  %v869 = vpack.c.bf16 %v851, %v851
  %v870 = vpack.c.bf16 %v852, %v852
  %v871 = vpack.c.bf16 %v853, %v853
  %v872 = vpack.c.bf16 %v854, %v854
  %v873 = vpack.c.bf16 %v855, %v855
  %875 = vset.pattern.permute.xlu0 32
  %876 = vperm.xlu0 %875, %v856
  %v877 = vpop.permute.xlu0 %876
  %880 = vset.pattern.permute.xlu0 32
  %881 = vperm.xlu0 %880, %v857
  %v882 = vpop.permute.xlu0 %881
  %885 = vset.pattern.permute.xlu0 32
  %886 = vperm.xlu0 %885, %v858
  %v887 = vpop.permute.xlu0 %886
  %vm889 = vcmask 64512
  %v891 = vsel %vm889, %v859, 0
  %v894 = vsel %vm889, %v860, 0
  %vm896 = vcmask 1043456
  %v898 = vsel %vm896, %v861, 0
  %v901 = vsel %vm896, %v862, 0
  %v904 = vsel %vm896, %v863, 0
  %v907 = vsel %vm896, %v864, 0
  %v910 = vsel %vm896, %v865, 0
  %v913 = vsel %vm896, %v866, 0
  %v916 = vsel %vm896, %v867, 0
  %v919 = vsel %vm896, %v868, 0
  %v922 = vsel %vm896, %v869, 0
  %v925 = vsel %vm896, %v870, 0
  %v928 = vsel %vm896, %v871, 0
  %v931 = vsel %vm896, %v872, 0
  %v934 = vsel %vm896, %v873, 0
  %936 = vmatprep.subr.bf16.mxu0 0
  %937 = vmatpush1.bf16.msra.mxu0 0
  %938 = vmatprep.subr.bf16.mxu0 0
  %939 = vmatpush1.bf16.msra.mxu0 0
  %940 = vmatprep.subr.bf16.mxu0 0
  %941 = vmatpush1.bf16.msra.mxu0 0
  %942 = vmatprep.subr.bf16.mxu0 0
  %943 = vmatpush1.bf16.msra.mxu0 0
  %944 = vmatprep.subr.bf16.mxu0 0
  %945 = vmatpush1.bf16.msra.mxu0 0
  %946 = vmatprep.subr.bf16.mxu0 0
  %947 = vmatpush1.bf16.msra.mxu0 0
  %948 = vmatprep.subr.bf16.mxu0 0
  %949 = vmatpush1.bf16.msra.mxu0 0
  %950 = vmatprep.subr.bf16.mxu0 %v901
  %951 = vmatpush1.bf16.msra.mxu0 %v898
  %952 = vmatprep.subr.bf16.mxu0 0
  %953 = vmatpush2.bf16.msra.mxu0 0
  %954 = vmatprep.subr.bf16.mxu0 0
  %955 = vmatpush2.bf16.msra.mxu0 0
  %956 = vmatprep.subr.bf16.mxu0 0
  %957 = vmatpush2.bf16.msra.mxu0 0
  %958 = vmatprep.subr.bf16.mxu0 0
  %959 = vmatpush2.bf16.msra.mxu0 0
  %960 = vmatprep.subr.bf16.mxu0 0
  %961 = vmatpush2.bf16.msra.mxu0 0
  %962 = vmatprep.subr.bf16.mxu0 0
  %963 = vmatpush2.bf16.msra.mxu0 0
  %964 = vmatprep.subr.bf16.mxu0 0
  %965 = vmatpush2.bf16.msra.mxu0 0
  %966 = vmatprep.subr.bf16.mxu0 0
  %967 = vmatpush2.bf16.msra.mxu0 0
  %968 = vmatprep.mubr.bf16.mxu0 0
  %969 = vmatmul.mubr.bf16.gmra.mxu0 %v891
  %v970 = vpop.f32.mrf.mxu0
  %v971 = vadd.f32 %v877, %v970
  %v972 = vpop.f32.mrf.mxu0
  %v973 = vadd.f32 %v877, %v972
  %v974 = vpop.f32.mrf.mxu0
  %v975 = vadd.f32 %v882, %v974
  %v976 = vpop.f32.mrf.mxu0
  %v977 = vadd.f32 %v882, %v976
  %978 = vmatprep.mubr.bf16.mxu0 0
  %979 = vmatmul.mubr.bf16.gmra.mxu0 %v894
  %v980 = vpop.f32.mrf.mxu0
  %v981 = vadd.f32 %v887, %v980
  %v982 = vpop.f32.mrf.mxu0
  %v983 = vadd.f32 %v887, %v982
  %v984 = vpop.f32.mrf.mxu0
  %v985 = vpop.f32.mrf.mxu0
  %986 = vdwg.mxu0
  %987 = vmatprep.subr.bf16.mxu0 0
  %988 = vmatpush1.bf16.msra.mxu0 0
  %989 = vmatprep.subr.bf16.mxu0 0
  %990 = vmatpush1.bf16.msra.mxu0 0
  %991 = vmatprep.subr.bf16.mxu0 0
  %992 = vmatpush1.bf16.msra.mxu0 0
  %993 = vmatprep.subr.bf16.mxu0 0
  %994 = vmatpush1.bf16.msra.mxu0 0
  %995 = vmatprep.subr.bf16.mxu0 0
  %996 = vmatpush1.bf16.msra.mxu0 0
  %997 = vmatprep.subr.bf16.mxu0 0
  %998 = vmatpush1.bf16.msra.mxu0 0
  %999 = vmatprep.subr.bf16.mxu0 0
  %1000 = vmatpush1.bf16.msra.mxu0 0
  %1001 = vmatprep.subr.bf16.mxu0 %v907
  %1002 = vmatpush1.bf16.msra.mxu0 %v904
  %1003 = vmatprep.subr.bf16.mxu0 0
  %1004 = vmatpush2.bf16.msra.mxu0 0
  %1005 = vmatprep.subr.bf16.mxu0 0
  %1006 = vmatpush2.bf16.msra.mxu0 0
  %1007 = vmatprep.subr.bf16.mxu0 0
  %1008 = vmatpush2.bf16.msra.mxu0 0
  %1009 = vmatprep.subr.bf16.mxu0 0
  %1010 = vmatpush2.bf16.msra.mxu0 0
  %1011 = vmatprep.subr.bf16.mxu0 0
  %1012 = vmatpush2.bf16.msra.mxu0 0
  %1013 = vmatprep.subr.bf16.mxu0 0
  %1014 = vmatpush2.bf16.msra.mxu0 0
  %1015 = vmatprep.subr.bf16.mxu0 0
  %1016 = vmatpush2.bf16.msra.mxu0 0
  %1017 = vmatprep.subr.bf16.mxu0 0
  %1018 = vmatpush2.bf16.msra.mxu0 0
  %1019 = vmatprep.mubr.bf16.mxu0 0
  %1020 = vmatmul.mubr.bf16.gmra.mxu0 %v891
  %v1021 = vpop.f32.mrf.mxu0
  %v1022 = vadd.f32 %v877, %v1021
  %v1023 = vpop.f32.mrf.mxu0
  %v1024 = vadd.f32 %v877, %v1023
  %v1025 = vpop.f32.mrf.mxu0
  %v1026 = vadd.f32 %v882, %v1025
  %v1027 = vpop.f32.mrf.mxu0
  %v1028 = vadd.f32 %v882, %v1027
  %1029 = vmatprep.mubr.bf16.mxu0 0
  %1030 = vmatmul.mubr.bf16.gmra.mxu0 %v894
  %v1031 = vpop.f32.mrf.mxu0
  %v1032 = vadd.f32 %v887, %v1031
  %v1033 = vpop.f32.mrf.mxu0
  %v1034 = vadd.f32 %v887, %v1033
  %v1035 = vpop.f32.mrf.mxu0
  %v1036 = vpop.f32.mrf.mxu0
  %1037 = vdwg.mxu0
  %1038 = vmatprep.subr.bf16.mxu0 0
  %1039 = vmatpush1.bf16.msra.mxu0 0
  %1040 = vmatprep.subr.bf16.mxu0 0
  %1041 = vmatpush1.bf16.msra.mxu0 0
  %1042 = vmatprep.subr.bf16.mxu0 0
  %1043 = vmatpush1.bf16.msra.mxu0 0
  %1044 = vmatprep.subr.bf16.mxu0 0
  %1045 = vmatpush1.bf16.msra.mxu0 0
  %1046 = vmatprep.subr.bf16.mxu0 0
  %1047 = vmatpush1.bf16.msra.mxu0 0
  %1048 = vmatprep.subr.bf16.mxu0 0
  %1049 = vmatpush1.bf16.msra.mxu0 0
  %1050 = vmatprep.subr.bf16.mxu0 0
  %1051 = vmatpush1.bf16.msra.mxu0 0
  %1052 = vmatprep.subr.bf16.mxu0 %v913
  %1053 = vmatpush1.bf16.msra.mxu0 %v910
  %1054 = vmatprep.subr.bf16.mxu0 0
  %1055 = vmatpush2.bf16.msra.mxu0 0
  %1056 = vmatprep.subr.bf16.mxu0 0
  %1057 = vmatpush2.bf16.msra.mxu0 0
  %1058 = vmatprep.subr.bf16.mxu0 0
  %1059 = vmatpush2.bf16.msra.mxu0 0
  %1060 = vmatprep.subr.bf16.mxu0 0
  %1061 = vmatpush2.bf16.msra.mxu0 0
  %1062 = vmatprep.subr.bf16.mxu0 0
  %1063 = vmatpush2.bf16.msra.mxu0 0
  %1064 = vmatprep.subr.bf16.mxu0 0
  %1065 = vmatpush2.bf16.msra.mxu0 0
  %1066 = vmatprep.subr.bf16.mxu0 0
  %1067 = vmatpush2.bf16.msra.mxu0 0
  %1068 = vmatprep.subr.bf16.mxu0 0
  %1069 = vmatpush2.bf16.msra.mxu0 0
  %1070 = vmatprep.mubr.bf16.mxu0 0
  %1071 = vmatmul.mubr.bf16.gmra.mxu0 %v891
  %v1072 = vpop.f32.mrf.mxu0
  %v1073 = vadd.f32 %v877, %v1072
  %v1074 = vpop.f32.mrf.mxu0
  %v1075 = vadd.f32 %v877, %v1074
  %v1076 = vpop.f32.mrf.mxu0
  %v1077 = vadd.f32 %v882, %v1076
  %v1078 = vpop.f32.mrf.mxu0
  %v1079 = vadd.f32 %v882, %v1078
  %1080 = vmatprep.mubr.bf16.mxu0 0
  %1081 = vmatmul.mubr.bf16.gmra.mxu0 %v894
  %v1082 = vpop.f32.mrf.mxu0
  %v1083 = vadd.f32 %v887, %v1082
  %v1084 = vpop.f32.mrf.mxu0
  %v1085 = vadd.f32 %v887, %v1084
  %v1086 = vpop.f32.mrf.mxu0
  %v1087 = vpop.f32.mrf.mxu0
  %1088 = vdwg.mxu0
  %1089 = vmatprep.subr.bf16.mxu0 0
  %1090 = vmatpush1.bf16.msra.mxu0 0
  %1091 = vmatprep.subr.bf16.mxu0 0
  %1092 = vmatpush1.bf16.msra.mxu0 0
  %1093 = vmatprep.subr.bf16.mxu0 0
  %1094 = vmatpush1.bf16.msra.mxu0 0
  %1095 = vmatprep.subr.bf16.mxu0 0
  %1096 = vmatpush1.bf16.msra.mxu0 0
  %1097 = vmatprep.subr.bf16.mxu0 0
  %1098 = vmatpush1.bf16.msra.mxu0 0
  %1099 = vmatprep.subr.bf16.mxu0 0
  %1100 = vmatpush1.bf16.msra.mxu0 0
  %1101 = vmatprep.subr.bf16.mxu0 0
  %1102 = vmatpush1.bf16.msra.mxu0 0
  %1103 = vmatprep.subr.bf16.mxu0 %v919
  %1104 = vmatpush1.bf16.msra.mxu0 %v916
  %1105 = vmatprep.subr.bf16.mxu0 0
  %1106 = vmatpush2.bf16.msra.mxu0 0
  %1107 = vmatprep.subr.bf16.mxu0 0
  %1108 = vmatpush2.bf16.msra.mxu0 0
  %1109 = vmatprep.subr.bf16.mxu0 0
  %1110 = vmatpush2.bf16.msra.mxu0 0
  %1111 = vmatprep.subr.bf16.mxu0 0
  %1112 = vmatpush2.bf16.msra.mxu0 0
  %1113 = vmatprep.subr.bf16.mxu0 0
  %1114 = vmatpush2.bf16.msra.mxu0 0
  %1115 = vmatprep.subr.bf16.mxu0 0
  %1116 = vmatpush2.bf16.msra.mxu0 0
  %1117 = vmatprep.subr.bf16.mxu0 0
  %1118 = vmatpush2.bf16.msra.mxu0 0
  %1119 = vmatprep.subr.bf16.mxu0 0
  %1120 = vmatpush2.bf16.msra.mxu0 0
  %1121 = vmatprep.mubr.bf16.mxu0 0
  %1122 = vmatmul.mubr.bf16.gmra.mxu0 %v891
  %v1123 = vpop.f32.mrf.mxu0
  %v1124 = vadd.f32 %v877, %v1123
  %v1125 = vpop.f32.mrf.mxu0
  %v1126 = vadd.f32 %v877, %v1125
  %v1127 = vpop.f32.mrf.mxu0
  %v1128 = vadd.f32 %v882, %v1127
  %v1129 = vpop.f32.mrf.mxu0
  %v1130 = vadd.f32 %v882, %v1129
  %1131 = vmatprep.mubr.bf16.mxu0 0
  %1132 = vmatmul.mubr.bf16.gmra.mxu0 %v894
  %v1133 = vpop.f32.mrf.mxu0
  %v1134 = vadd.f32 %v887, %v1133
  %v1135 = vpop.f32.mrf.mxu0
  %v1136 = vadd.f32 %v887, %v1135
  %v1137 = vpop.f32.mrf.mxu0
  %v1138 = vpop.f32.mrf.mxu0
  %1139 = vdwg.mxu0
  %1140 = vmatprep.subr.bf16.mxu0 0
  %1141 = vmatpush1.bf16.msra.mxu0 0
  %1142 = vmatprep.subr.bf16.mxu0 0
  %1143 = vmatpush1.bf16.msra.mxu0 0
  %1144 = vmatprep.subr.bf16.mxu0 0
  %1145 = vmatpush1.bf16.msra.mxu0 0
  %1146 = vmatprep.subr.bf16.mxu0 0
  %1147 = vmatpush1.bf16.msra.mxu0 0
  %1148 = vmatprep.subr.bf16.mxu0 0
  %1149 = vmatpush1.bf16.msra.mxu0 0
  %1150 = vmatprep.subr.bf16.mxu0 0
  %1151 = vmatpush1.bf16.msra.mxu0 0
  %1152 = vmatprep.subr.bf16.mxu0 0
  %1153 = vmatpush1.bf16.msra.mxu0 0
  %1154 = vmatprep.subr.bf16.mxu0 %v925
  %1155 = vmatpush1.bf16.msra.mxu0 %v922
  %1156 = vmatprep.subr.bf16.mxu0 0
  %1157 = vmatpush2.bf16.msra.mxu0 0
  %1158 = vmatprep.subr.bf16.mxu0 0
  %1159 = vmatpush2.bf16.msra.mxu0 0
  %1160 = vmatprep.subr.bf16.mxu0 0
  %1161 = vmatpush2.bf16.msra.mxu0 0
  %1162 = vmatprep.subr.bf16.mxu0 0
  %1163 = vmatpush2.bf16.msra.mxu0 0
  %1164 = vmatprep.subr.bf16.mxu0 0
  %1165 = vmatpush2.bf16.msra.mxu0 0
  %1166 = vmatprep.subr.bf16.mxu0 0
  %1167 = vmatpush2.bf16.msra.mxu0 0
  %1168 = vmatprep.subr.bf16.mxu0 0
  %1169 = vmatpush2.bf16.msra.mxu0 0
  %1170 = vmatprep.subr.bf16.mxu0 0
  %1171 = vmatpush2.bf16.msra.mxu0 0
  %1172 = vmatprep.mubr.bf16.mxu0 0
  %1173 = vmatmul.mubr.bf16.gmra.mxu0 %v891
  %v1174 = vpop.f32.mrf.mxu0
  %v1175 = vadd.f32 %v877, %v1174
  %v1176 = vpop.f32.mrf.mxu0
  %v1177 = vadd.f32 %v877, %v1176
  %v1178 = vpop.f32.mrf.mxu0
  %v1179 = vadd.f32 %v882, %v1178
  %v1180 = vpop.f32.mrf.mxu0
  %v1181 = vadd.f32 %v882, %v1180
  %1182 = vmatprep.mubr.bf16.mxu0 0
  %1183 = vmatmul.mubr.bf16.gmra.mxu0 %v894
  %v1184 = vpop.f32.mrf.mxu0
  %v1185 = vadd.f32 %v887, %v1184
  %v1186 = vpop.f32.mrf.mxu0
  %v1187 = vadd.f32 %v887, %v1186
  %v1188 = vpop.f32.mrf.mxu0
  %v1189 = vpop.f32.mrf.mxu0
  %1190 = vdwg.mxu0
  %1191 = vmatprep.subr.bf16.mxu0 0
  %1192 = vmatpush1.bf16.msra.mxu0 0
  %1193 = vmatprep.subr.bf16.mxu0 0
  %1194 = vmatpush1.bf16.msra.mxu0 0
  %1195 = vmatprep.subr.bf16.mxu0 0
  %1196 = vmatpush1.bf16.msra.mxu0 0
  %1197 = vmatprep.subr.bf16.mxu0 0
  %1198 = vmatpush1.bf16.msra.mxu0 0
  %1199 = vmatprep.subr.bf16.mxu0 0
  %1200 = vmatpush1.bf16.msra.mxu0 0
  %1201 = vmatprep.subr.bf16.mxu0 0
  %1202 = vmatpush1.bf16.msra.mxu0 0
  %1203 = vmatprep.subr.bf16.mxu0 0
  %1204 = vmatpush1.bf16.msra.mxu0 0
  %1205 = vmatprep.subr.bf16.mxu0 %v931
  %1206 = vmatpush1.bf16.msra.mxu0 %v928
  %1207 = vmatprep.subr.bf16.mxu0 0
  %1208 = vmatpush2.bf16.msra.mxu0 0
  %1209 = vmatprep.subr.bf16.mxu0 0
  %1210 = vmatpush2.bf16.msra.mxu0 0
  %1211 = vmatprep.subr.bf16.mxu0 0
  %1212 = vmatpush2.bf16.msra.mxu0 0
  %1213 = vmatprep.subr.bf16.mxu0 0
  %1214 = vmatpush2.bf16.msra.mxu0 0
  %1215 = vmatprep.subr.bf16.mxu0 0
  %1216 = vmatpush2.bf16.msra.mxu0 0
  %1217 = vmatprep.subr.bf16.mxu0 0
  %1218 = vmatpush2.bf16.msra.mxu0 0
  %1219 = vmatprep.subr.bf16.mxu0 0
  %1220 = vmatpush2.bf16.msra.mxu0 0
  %1221 = vmatprep.subr.bf16.mxu0 0
  %1222 = vmatpush2.bf16.msra.mxu0 0
  %1223 = vmatprep.mubr.bf16.mxu0 0
  %1224 = vmatmul.mubr.bf16.gmra.mxu0 %v891
  %v1225 = vpop.f32.mrf.mxu0
  %v1226 = vadd.f32 %v877, %v1225
  %v1227 = vpop.f32.mrf.mxu0
  %v1228 = vadd.f32 %v877, %v1227
  %v1229 = vpop.f32.mrf.mxu0
  %v1230 = vadd.f32 %v882, %v1229
  %v1231 = vpop.f32.mrf.mxu0
  %v1232 = vadd.f32 %v882, %v1231
  %1233 = vmatprep.mubr.bf16.mxu0 0
  %1234 = vmatmul.mubr.bf16.gmra.mxu0 %v894
  %v1235 = vpop.f32.mrf.mxu0
  %v1236 = vadd.f32 %v887, %v1235
  %v1237 = vpop.f32.mrf.mxu0
  %v1238 = vadd.f32 %v887, %v1237
  %v1239 = vpop.f32.mrf.mxu0
  %v1240 = vpop.f32.mrf.mxu0
  %1241 = vdwg.mxu0
  %1242 = vmatprep.subr.bf16.mxu0 0
  %1243 = vmatpush1.bf16.msra.mxu0 0
  %1244 = vmatprep.subr.bf16.mxu0 0
  %1245 = vmatpush1.bf16.msra.mxu0 0
  %1246 = vmatprep.subr.bf16.mxu0 0
  %1247 = vmatpush1.bf16.msra.mxu0 0
  %1248 = vmatprep.subr.bf16.mxu0 0
  %1249 = vmatpush1.bf16.msra.mxu0 0
  %1250 = vmatprep.subr.bf16.mxu0 0
  %1251 = vmatpush1.bf16.msra.mxu0 0
  %1252 = vmatprep.subr.bf16.mxu0 0
  %1253 = vmatpush1.bf16.msra.mxu0 0
  %1254 = vmatprep.subr.bf16.mxu0 0
  %1255 = vmatpush1.bf16.msra.mxu0 0
  %1256 = vmatprep.subr.bf16.mxu0 0
  %1257 = vmatpush1.bf16.msra.mxu0 %v934
  %1258 = vmatprep.subr.bf16.mxu0 0
  %1259 = vmatpush2.bf16.msra.mxu0 0
  %1260 = vmatprep.subr.bf16.mxu0 0
  %1261 = vmatpush2.bf16.msra.mxu0 0
  %1262 = vmatprep.subr.bf16.mxu0 0
  %1263 = vmatpush2.bf16.msra.mxu0 0
  %1264 = vmatprep.subr.bf16.mxu0 0
  %1265 = vmatpush2.bf16.msra.mxu0 0
  %1266 = vmatprep.subr.bf16.mxu0 0
  %1267 = vmatpush2.bf16.msra.mxu0 0
  %1268 = vmatprep.subr.bf16.mxu0 0
  %1269 = vmatpush2.bf16.msra.mxu0 0
  %1270 = vmatprep.subr.bf16.mxu0 0
  %1271 = vmatpush2.bf16.msra.mxu0 0
  %1272 = vmatprep.subr.bf16.mxu0 0
  %1273 = vmatpush2.bf16.msra.mxu0 0
  %1274 = vmatprep.mubr.bf16.mxu0 0
  %1275 = vmatmul.mubr.bf16.gmra.mxu0 %v891
  %v1276 = vpop.f32.mrf.mxu0
  %v1277 = vadd.f32 %v877, %v1276
  %v1278 = vpop.f32.mrf.mxu0
  %v1279 = vpop.f32.mrf.mxu0
  %v1280 = vadd.f32 %v882, %v1279
  %v1281 = vpop.f32.mrf.mxu0
  %1282 = vmatprep.mubr.bf16.mxu0 0
  %1283 = vmatmul.mubr.bf16.gmra.mxu0 %v894
  %v1284 = vpop.f32.mrf.mxu0
  %v1285 = vadd.f32 %v887, %v1284
  %v1286 = vpop.f32.mrf.mxu0
  %v1287 = vpop.f32.mrf.mxu0
  %v1288 = vpop.f32.mrf.mxu0
  %1289 = vdwg.mxu0
  %vm1290 = vcmp.ge.s32.totalorder %v316, 2
  %vm1291 = vcmp.ge.s32.totalorder %v317, 2
  %vm1292 = vcmp.ge.s32.totalorder %v318, 2
  %vm1293 = vcmp.ge.s32.totalorder %v319, 2
  %vm1294 = vcmp.ge.s32.totalorder %v320, 2
  %vm1295 = vcmp.ge.s32.totalorder %v321, 2
  %vm1296 = vcmp.ge.s32.totalorder %v322, 2
  %vm1297 = vcmp.ge.s32.totalorder %v323, 2
  %vm1298 = vcmp.ge.s32.totalorder %v324, 2
  %vm1299 = vcmp.ge.s32.totalorder %v325, 2
  %vm1300 = vcmp.ge.s32.totalorder %v326, 2
  %vm1301 = vcmp.ge.s32.totalorder %v327, 2
  %vm1302 = vcmp.ge.s32.totalorder %v328, 2
  %vm1303 = vcmp.le.s32.totalorder %v316, 37
  %vm1304 = vcmp.le.s32.totalorder %v317, 37
  %vm1305 = vcmp.le.s32.totalorder %v318, 37
  %vm1306 = vcmp.le.s32.totalorder %v319, 37
  %vm1307 = vcmp.le.s32.totalorder %v320, 37
  %vm1308 = vcmp.le.s32.totalorder %v321, 37
  %vm1309 = vcmp.le.s32.totalorder %v322, 37
  %vm1310 = vcmp.le.s32.totalorder %v323, 37
  %vm1311 = vcmp.le.s32.totalorder %v324, 37
  %vm1312 = vcmp.le.s32.totalorder %v325, 37
  %vm1313 = vcmp.le.s32.totalorder %v326, 37
  %vm1314 = vcmp.le.s32.totalorder %v327, 37
  %vm1315 = vcmp.le.s32.totalorder %v328, 37
  %vm1316 = vmand %vm1290, %vm1303
  %vm1317 = vmand %vm1291, %vm1304
  %vm1318 = vmand %vm1292, %vm1305
  %vm1319 = vmand %vm1293, %vm1306
  %vm1320 = vmand %vm1294, %vm1307
  %vm1321 = vmand %vm1295, %vm1308
  %vm1322 = vmand %vm1296, %vm1309
  %vm1323 = vmand %vm1297, %vm1310
  %vm1324 = vmand %vm1298, %vm1311
  %vm1325 = vmand %vm1299, %vm1312
  %vm1326 = vmand %vm1300, %vm1313
  %vm1327 = vmand %vm1301, %vm1314
  %vm1328 = vmand %vm1302, %vm1315
  %vm1329 = vcmp.ge.s32.totalorder %v342, 2
  %vm1330 = vcmp.ge.s32.totalorder %v343, 2
  %vm1331 = vcmp.ge.s32.totalorder %v344, 2
  %vm1332 = vcmp.ge.s32.totalorder %v345, 2
  %vm1333 = vcmp.ge.s32.totalorder %v346, 2
  %vm1334 = vcmp.ge.s32.totalorder %v347, 2
  %vm1335 = vcmp.ge.s32.totalorder %v348, 2
  %vm1336 = vcmp.ge.s32.totalorder %v349, 2
  %vm1337 = vcmp.ge.s32.totalorder %v350, 2
  %vm1338 = vcmp.ge.s32.totalorder %v351, 2
  %vm1339 = vcmp.ge.s32.totalorder %v352, 2
  %vm1340 = vcmp.ge.s32.totalorder %v353, 2
  %vm1341 = vcmp.ge.s32.totalorder %v354, 2
  %vm1342 = vmand %vm1316, %vm1329
  %vm1343 = vmand %vm1317, %vm1330
  %vm1344 = vmand %vm1318, %vm1331
  %vm1345 = vmand %vm1319, %vm1332
  %vm1346 = vmand %vm1320, %vm1333
  %vm1347 = vmand %vm1321, %vm1334
  %vm1348 = vmand %vm1322, %vm1335
  %vm1349 = vmand %vm1323, %vm1336
  %vm1350 = vmand %vm1324, %vm1337
  %vm1351 = vmand %vm1325, %vm1338
  %vm1352 = vmand %vm1326, %vm1339
  %vm1353 = vmand %vm1327, %vm1340
  %vm1354 = vmand %vm1328, %vm1341
  %vm1355 = vcmp.le.s32.totalorder %v342, 37
  %vm1356 = vcmp.le.s32.totalorder %v343, 37
  %vm1357 = vcmp.le.s32.totalorder %v344, 37
  %vm1358 = vcmp.le.s32.totalorder %v345, 37
  %vm1359 = vcmp.le.s32.totalorder %v346, 37
  %vm1360 = vcmp.le.s32.totalorder %v347, 37
  %vm1361 = vcmp.le.s32.totalorder %v348, 37
  %vm1362 = vcmp.le.s32.totalorder %v349, 37
  %vm1363 = vcmp.le.s32.totalorder %v350, 37
  %vm1364 = vcmp.le.s32.totalorder %v351, 37
  %vm1365 = vcmp.le.s32.totalorder %v352, 37
  %vm1366 = vcmp.le.s32.totalorder %v353, 37
  %vm1367 = vcmp.le.s32.totalorder %v354, 37
  %vm1368 = vmand %vm1342, %vm1355
  %vm1369 = vmand %vm1343, %vm1356
  %vm1370 = vmand %vm1344, %vm1357
  %vm1371 = vmand %vm1345, %vm1358
  %vm1372 = vmand %vm1346, %vm1359
  %vm1373 = vmand %vm1347, %vm1360
  %vm1374 = vmand %vm1348, %vm1361
  %vm1375 = vmand %vm1349, %vm1362
  %vm1376 = vmand %vm1350, %vm1363
  %vm1377 = vmand %vm1351, %vm1364
  %vm1378 = vmand %vm1352, %vm1365
  %vm1379 = vmand %vm1353, %vm1366
  %vm1380 = vmand %vm1354, %vm1367
  %v1381 = vsel %vm1368, 1, 0
  %v1382 = vsel %vm1369, 1, 0
  %v1383 = vsel %vm1370, 1, 0
  %v1384 = vsel %vm1371, 1, 0
  %v1385 = vsel %vm1372, 1, 0
  %v1386 = vsel %vm1373, 1, 0
  %v1387 = vsel %vm1374, 1, 0
  %v1388 = vsel %vm1375, 1, 0
  %v1389 = vsel %vm1376, 1, 0
  %v1390 = vsel %vm1377, 1, 0
  %v1391 = vsel %vm1378, 1, 0
  %v1392 = vsel %vm1379, 1, 0
  %v1393 = vsel %vm1380, 1, 0
  %v1394 = vcvt.s32.f32 %v1381
  %v1395 = vcvt.s32.f32 %v1382
  %v1396 = vcvt.s32.f32 %v1383
  %v1397 = vcvt.s32.f32 %v1384
  %v1398 = vcvt.s32.f32 %v1385
  %v1399 = vcvt.s32.f32 %v1386
  %v1400 = vcvt.s32.f32 %v1387
  %v1401 = vcvt.s32.f32 %v1388
  %v1402 = vcvt.s32.f32 %v1389
  %v1403 = vcvt.s32.f32 %v1390
  %v1404 = vcvt.s32.f32 %v1391
  %v1405 = vcvt.s32.f32 %v1392
  %v1406 = vcvt.s32.f32 %v1393
  %v1407 = vmul.f32 %v971, %v1394
  %v1408 = vmul.f32 %v973, %v1395
  %v1409 = vmul.f32 %v1022, %v1396
  %v1410 = vmul.f32 %v1024, %v1397
  %v1411 = vmul.f32 %v1073, %v1398
  %v1412 = vmul.f32 %v1075, %v1399
  %v1413 = vmul.f32 %v1124, %v1400
  %v1414 = vmul.f32 %v1126, %v1401
  %v1415 = vmul.f32 %v1175, %v1402
  %v1416 = vmul.f32 %v1177, %v1403
  %v1417 = vmul.f32 %v1226, %v1404
  %v1418 = vmul.f32 %v1228, %v1405
  %v1419 = vmul.f32 %v1277, %v1406
  %v1420 = vmul.f32 %v975, %v1394
  %v1421 = vmul.f32 %v977, %v1395
  %v1422 = vmul.f32 %v1026, %v1396
  %v1423 = vmul.f32 %v1028, %v1397
  %v1424 = vmul.f32 %v1077, %v1398
  %v1425 = vmul.f32 %v1079, %v1399
  %v1426 = vmul.f32 %v1128, %v1400
  %v1427 = vmul.f32 %v1130, %v1401
  %v1428 = vmul.f32 %v1179, %v1402
  %v1429 = vmul.f32 %v1181, %v1403
  %v1430 = vmul.f32 %v1230, %v1404
  %v1431 = vmul.f32 %v1232, %v1405
  %v1432 = vmul.f32 %v1280, %v1406
  %v1433 = vmul.f32 %v981, %v1394
  %v1434 = vmul.f32 %v983, %v1395
  %v1435 = vmul.f32 %v1032, %v1396
  %v1436 = vmul.f32 %v1034, %v1397
  %v1437 = vmul.f32 %v1083, %v1398
  %v1438 = vmul.f32 %v1085, %v1399
  %v1439 = vmul.f32 %v1134, %v1400
  %v1440 = vmul.f32 %v1136, %v1401
  %v1441 = vmul.f32 %v1185, %v1402
  %v1442 = vmul.f32 %v1187, %v1403
  %v1443 = vmul.f32 %v1236, %v1404
  %v1444 = vmul.f32 %v1238, %v1405
  %v1445 = vmul.f32 %v1285, %v1406
  %v1446 = vld [vmem:[%s1 + $0x20] sm:$0xff]
  %v1447 = vld [vmem:[%s1 + $0x28] sm:$0xff]
  %v1448 = vld [vmem:[%s1 + $0x30] sm:$0xff]
  %v1449 = vld [vmem:[%s1 + $0x38] sm:$0xff]
  %v1450 = vpack.c.bf16 %v1447, %v1446
  %v1451 = vpack.c.bf16 %v1449, %v1448
  %v1452 = vpack.c.bf16 %v1420, %v1407
  %v1453 = vpack.c.bf16 %v1421, %v1408
  %v1454 = vpack.c.bf16 %v1422, %v1409
  %v1455 = vpack.c.bf16 %v1423, %v1410
  %v1456 = vpack.c.bf16 %v1424, %v1411
  %v1457 = vpack.c.bf16 %v1425, %v1412
  %v1458 = vpack.c.bf16 %v1426, %v1413
  %v1459 = vpack.c.bf16 %v1427, %v1414
  %v1460 = vpack.c.bf16 %v1428, %v1415
  %v1461 = vpack.c.bf16 %v1429, %v1416
  %v1462 = vpack.c.bf16 %v1430, %v1417
  %v1463 = vpack.c.bf16 %v1431, %v1418
  %v1464 = vpack.c.bf16 %v1432, %v1419
  %v1465 = vpack.c.bf16 %v1433, %v1433
  %v1466 = vpack.c.bf16 %v1434, %v1434
  %v1467 = vpack.c.bf16 %v1435, %v1435
  %v1468 = vpack.c.bf16 %v1436, %v1436
  %v1469 = vpack.c.bf16 %v1437, %v1437
  %v1470 = vpack.c.bf16 %v1438, %v1438
  %v1471 = vpack.c.bf16 %v1439, %v1439
  %v1472 = vpack.c.bf16 %v1440, %v1440
  %v1473 = vpack.c.bf16 %v1441, %v1441
  %v1474 = vpack.c.bf16 %v1442, %v1442
  %v1475 = vpack.c.bf16 %v1443, %v1443
  %v1476 = vpack.c.bf16 %v1444, %v1444
  %v1477 = vpack.c.bf16 %v1445, %v1445
  %1479 = vset.pattern.permute.xlu0 32
  %1480 = vperm.xlu0 %1479, %v1446
  %v1481 = vpop.permute.xlu0 %1480
  %1484 = vset.pattern.permute.xlu0 32
  %1485 = vperm.xlu0 %1484, %v1447
  %v1486 = vpop.permute.xlu0 %1485
  %1489 = vset.pattern.permute.xlu0 32
  %1490 = vperm.xlu0 %1489, %v1448
  %v1491 = vpop.permute.xlu0 %1490
  %1494 = vset.pattern.permute.xlu0 32
  %1495 = vperm.xlu0 %1494, %v1449
  %v1496 = vpop.permute.xlu0 %1495
  %vm1498 = vcmask 179200
  %v1500 = vsel %vm1498, %v1450, 0
  %v1503 = vsel %vm1498, %v1451, 0
  %vm1505 = vcmask 1042432
  %v1507 = vsel %vm1505, %v1465, 0
  %v1510 = vsel %vm1505, %v1466, 0
  %v1513 = vsel %vm1505, %v1467, 0
  %v1516 = vsel %vm1505, %v1468, 0
  %v1519 = vsel %vm1505, %v1469, 0
  %v1522 = vsel %vm1505, %v1470, 0
  %v1525 = vsel %vm1505, %v1471, 0
  %v1528 = vsel %vm1505, %v1472, 0
  %v1531 = vsel %vm1505, %v1473, 0
  %v1534 = vsel %vm1505, %v1474, 0
  %v1537 = vsel %vm1505, %v1475, 0
  %v1540 = vsel %vm1505, %v1476, 0
  %v1543 = vsel %vm1505, %v1477, 0
  %1545 = vmatprep.subr.bf16.mxu0 0
  %1546 = vmatpush1.bf16.msra.mxu0 0
  %1547 = vmatprep.subr.bf16.mxu0 0
  %1548 = vmatpush1.bf16.msra.mxu0 0
  %1549 = vmatprep.subr.bf16.mxu0 0
  %1550 = vmatpush1.bf16.msra.mxu0 0
  %1551 = vmatprep.subr.bf16.mxu0 0
  %1552 = vmatpush1.bf16.msra.mxu0 0
  %1553 = vmatprep.subr.bf16.mxu0 0
  %1554 = vmatpush1.bf16.msra.mxu0 0
  %1555 = vmatprep.subr.bf16.mxu0 0
  %1556 = vmatpush1.bf16.msra.mxu0 0
  %1557 = vmatprep.subr.bf16.mxu0 %v1510
  %1558 = vmatpush1.bf16.msra.mxu0 %v1507
  %1559 = vmatprep.subr.bf16.mxu0 %v1453
  %1560 = vmatpush1.bf16.msra.mxu0 %v1452
  %1561 = vmatprep.subr.bf16.mxu0 0
  %1562 = vmatpush2.bf16.msra.mxu0 0
  %1563 = vmatprep.subr.bf16.mxu0 0
  %1564 = vmatpush2.bf16.msra.mxu0 0
  %1565 = vmatprep.subr.bf16.mxu0 0
  %1566 = vmatpush2.bf16.msra.mxu0 0
  %1567 = vmatprep.subr.bf16.mxu0 0
  %1568 = vmatpush2.bf16.msra.mxu0 0
  %1569 = vmatprep.subr.bf16.mxu0 0
  %1570 = vmatpush2.bf16.msra.mxu0 0
  %1571 = vmatprep.subr.bf16.mxu0 0
  %1572 = vmatpush2.bf16.msra.mxu0 0
  %1573 = vmatprep.subr.bf16.mxu0 0
  %1574 = vmatpush2.bf16.msra.mxu0 0
  %1575 = vmatprep.subr.bf16.mxu0 0
  %1576 = vmatpush2.bf16.msra.mxu0 0
  %1577 = vmatprep.mubr.bf16.mxu0 0
  %1578 = vmatmul.mubr.bf16.gmra.mxu0 %v1500
  %v1579 = vpop.f32.mrf.mxu0
  %v1580 = vadd.f32 %v1481, %v1579
  %v1581 = vpop.f32.mrf.mxu0
  %v1582 = vadd.f32 %v1481, %v1581
  %v1583 = vpop.f32.mrf.mxu0
  %v1584 = vadd.f32 %v1486, %v1583
  %v1585 = vpop.f32.mrf.mxu0
  %v1586 = vadd.f32 %v1486, %v1585
  %1587 = vmatprep.mubr.bf16.mxu0 0
  %1588 = vmatmul.mubr.bf16.gmra.mxu0 %v1503
  %v1589 = vpop.f32.mrf.mxu0
  %v1590 = vadd.f32 %v1491, %v1589
  %v1591 = vpop.f32.mrf.mxu0
  %v1592 = vadd.f32 %v1491, %v1591
  %v1593 = vpop.f32.mrf.mxu0
  %v1594 = vadd.f32 %v1496, %v1593
  %v1595 = vpop.f32.mrf.mxu0
  %v1596 = vadd.f32 %v1496, %v1595
  %1597 = vdwg.mxu0
  %1598 = vmatprep.subr.bf16.mxu0 0
  %1599 = vmatpush1.bf16.msra.mxu0 0
  %1600 = vmatprep.subr.bf16.mxu0 0
  %1601 = vmatpush1.bf16.msra.mxu0 0
  %1602 = vmatprep.subr.bf16.mxu0 0
  %1603 = vmatpush1.bf16.msra.mxu0 0
  %1604 = vmatprep.subr.bf16.mxu0 0
  %1605 = vmatpush1.bf16.msra.mxu0 0
  %1606 = vmatprep.subr.bf16.mxu0 0
  %1607 = vmatpush1.bf16.msra.mxu0 0
  %1608 = vmatprep.subr.bf16.mxu0 0
  %1609 = vmatpush1.bf16.msra.mxu0 0
  %1610 = vmatprep.subr.bf16.mxu0 %v1516
  %1611 = vmatpush1.bf16.msra.mxu0 %v1513
  %1612 = vmatprep.subr.bf16.mxu0 %v1455
  %1613 = vmatpush1.bf16.msra.mxu0 %v1454
  %1614 = vmatprep.subr.bf16.mxu0 0
  %1615 = vmatpush2.bf16.msra.mxu0 0
  %1616 = vmatprep.subr.bf16.mxu0 0
  %1617 = vmatpush2.bf16.msra.mxu0 0
  %1618 = vmatprep.subr.bf16.mxu0 0
  %1619 = vmatpush2.bf16.msra.mxu0 0
  %1620 = vmatprep.subr.bf16.mxu0 0
  %1621 = vmatpush2.bf16.msra.mxu0 0
  %1622 = vmatprep.subr.bf16.mxu0 0
  %1623 = vmatpush2.bf16.msra.mxu0 0
  %1624 = vmatprep.subr.bf16.mxu0 0
  %1625 = vmatpush2.bf16.msra.mxu0 0
  %1626 = vmatprep.subr.bf16.mxu0 0
  %1627 = vmatpush2.bf16.msra.mxu0 0
  %1628 = vmatprep.subr.bf16.mxu0 0
  %1629 = vmatpush2.bf16.msra.mxu0 0
  %1630 = vmatprep.mubr.bf16.mxu0 0
  %1631 = vmatmul.mubr.bf16.gmra.mxu0 %v1500
  %v1632 = vpop.f32.mrf.mxu0
  %v1633 = vadd.f32 %v1481, %v1632
  %v1634 = vpop.f32.mrf.mxu0
  %v1635 = vadd.f32 %v1481, %v1634
  %v1636 = vpop.f32.mrf.mxu0
  %v1637 = vadd.f32 %v1486, %v1636
  %v1638 = vpop.f32.mrf.mxu0
  %v1639 = vadd.f32 %v1486, %v1638
  %1640 = vmatprep.mubr.bf16.mxu0 0
  %1641 = vmatmul.mubr.bf16.gmra.mxu0 %v1503
  %v1642 = vpop.f32.mrf.mxu0
  %v1643 = vadd.f32 %v1491, %v1642
  %v1644 = vpop.f32.mrf.mxu0
  %v1645 = vadd.f32 %v1491, %v1644
  %v1646 = vpop.f32.mrf.mxu0
  %v1647 = vadd.f32 %v1496, %v1646
  %v1648 = vpop.f32.mrf.mxu0
  %v1649 = vadd.f32 %v1496, %v1648
  %1650 = vdwg.mxu0
  %1651 = vmatprep.subr.bf16.mxu0 0
  %1652 = vmatpush1.bf16.msra.mxu0 0
  %1653 = vmatprep.subr.bf16.mxu0 0
  %1654 = vmatpush1.bf16.msra.mxu0 0
  %1655 = vmatprep.subr.bf16.mxu0 0
  %1656 = vmatpush1.bf16.msra.mxu0 0
  %1657 = vmatprep.subr.bf16.mxu0 0
  %1658 = vmatpush1.bf16.msra.mxu0 0
  %1659 = vmatprep.subr.bf16.mxu0 0
  %1660 = vmatpush1.bf16.msra.mxu0 0
  %1661 = vmatprep.subr.bf16.mxu0 0
  %1662 = vmatpush1.bf16.msra.mxu0 0
  %1663 = vmatprep.subr.bf16.mxu0 %v1522
  %1664 = vmatpush1.bf16.msra.mxu0 %v1519
  %1665 = vmatprep.subr.bf16.mxu0 %v1457
  %1666 = vmatpush1.bf16.msra.mxu0 %v1456
  %1667 = vmatprep.subr.bf16.mxu0 0
  %1668 = vmatpush2.bf16.msra.mxu0 0
  %1669 = vmatprep.subr.bf16.mxu0 0
  %1670 = vmatpush2.bf16.msra.mxu0 0
  %1671 = vmatprep.subr.bf16.mxu0 0
  %1672 = vmatpush2.bf16.msra.mxu0 0
  %1673 = vmatprep.subr.bf16.mxu0 0
  %1674 = vmatpush2.bf16.msra.mxu0 0
  %1675 = vmatprep.subr.bf16.mxu0 0
  %1676 = vmatpush2.bf16.msra.mxu0 0
  %1677 = vmatprep.subr.bf16.mxu0 0
  %1678 = vmatpush2.bf16.msra.mxu0 0
  %1679 = vmatprep.subr.bf16.mxu0 0
  %1680 = vmatpush2.bf16.msra.mxu0 0
  %1681 = vmatprep.subr.bf16.mxu0 0
  %1682 = vmatpush2.bf16.msra.mxu0 0
  %1683 = vmatprep.mubr.bf16.mxu0 0
  %1684 = vmatmul.mubr.bf16.gmra.mxu0 %v1500
  %v1685 = vpop.f32.mrf.mxu0
  %v1686 = vadd.f32 %v1481, %v1685
  %v1687 = vpop.f32.mrf.mxu0
  %v1688 = vadd.f32 %v1481, %v1687
  %v1689 = vpop.f32.mrf.mxu0
  %v1690 = vadd.f32 %v1486, %v1689
  %v1691 = vpop.f32.mrf.mxu0
  %v1692 = vadd.f32 %v1486, %v1691
  %1693 = vmatprep.mubr.bf16.mxu0 0
  %1694 = vmatmul.mubr.bf16.gmra.mxu0 %v1503
  %v1695 = vpop.f32.mrf.mxu0
  %v1696 = vadd.f32 %v1491, %v1695
  %v1697 = vpop.f32.mrf.mxu0
  %v1698 = vadd.f32 %v1491, %v1697
  %v1699 = vpop.f32.mrf.mxu0
  %v1700 = vadd.f32 %v1496, %v1699
  %v1701 = vpop.f32.mrf.mxu0
  %v1702 = vadd.f32 %v1496, %v1701
  %1703 = vdwg.mxu0
  %1704 = vmatprep.subr.bf16.mxu0 0
  %1705 = vmatpush1.bf16.msra.mxu0 0
  %1706 = vmatprep.subr.bf16.mxu0 0
  %1707 = vmatpush1.bf16.msra.mxu0 0
  %1708 = vmatprep.subr.bf16.mxu0 0
  %1709 = vmatpush1.bf16.msra.mxu0 0
  %1710 = vmatprep.subr.bf16.mxu0 0
  %1711 = vmatpush1.bf16.msra.mxu0 0
  %1712 = vmatprep.subr.bf16.mxu0 0
  %1713 = vmatpush1.bf16.msra.mxu0 0
  %1714 = vmatprep.subr.bf16.mxu0 0
  %1715 = vmatpush1.bf16.msra.mxu0 0
  %1716 = vmatprep.subr.bf16.mxu0 %v1528
  %1717 = vmatpush1.bf16.msra.mxu0 %v1525
  %1718 = vmatprep.subr.bf16.mxu0 %v1459
  %1719 = vmatpush1.bf16.msra.mxu0 %v1458
  %1720 = vmatprep.subr.bf16.mxu0 0
  %1721 = vmatpush2.bf16.msra.mxu0 0
  %1722 = vmatprep.subr.bf16.mxu0 0
  %1723 = vmatpush2.bf16.msra.mxu0 0
  %1724 = vmatprep.subr.bf16.mxu0 0
  %1725 = vmatpush2.bf16.msra.mxu0 0
  %1726 = vmatprep.subr.bf16.mxu0 0
  %1727 = vmatpush2.bf16.msra.mxu0 0
  %1728 = vmatprep.subr.bf16.mxu0 0
  %1729 = vmatpush2.bf16.msra.mxu0 0
  %1730 = vmatprep.subr.bf16.mxu0 0
  %1731 = vmatpush2.bf16.msra.mxu0 0
  %1732 = vmatprep.subr.bf16.mxu0 0
  %1733 = vmatpush2.bf16.msra.mxu0 0
  %1734 = vmatprep.subr.bf16.mxu0 0
  %1735 = vmatpush2.bf16.msra.mxu0 0
  %1736 = vmatprep.mubr.bf16.mxu0 0
  %1737 = vmatmul.mubr.bf16.gmra.mxu0 %v1500
  %v1738 = vpop.f32.mrf.mxu0
  %v1739 = vadd.f32 %v1481, %v1738
  %v1740 = vpop.f32.mrf.mxu0
  %v1741 = vadd.f32 %v1481, %v1740
  %v1742 = vpop.f32.mrf.mxu0
  %v1743 = vadd.f32 %v1486, %v1742
  %v1744 = vpop.f32.mrf.mxu0
  %v1745 = vadd.f32 %v1486, %v1744
  %1746 = vmatprep.mubr.bf16.mxu0 0
  %1747 = vmatmul.mubr.bf16.gmra.mxu0 %v1503
  %v1748 = vpop.f32.mrf.mxu0
  %v1749 = vadd.f32 %v1491, %v1748
  %v1750 = vpop.f32.mrf.mxu0
  %v1751 = vadd.f32 %v1491, %v1750
  %v1752 = vpop.f32.mrf.mxu0
  %v1753 = vadd.f32 %v1496, %v1752
  %v1754 = vpop.f32.mrf.mxu0
  %v1755 = vadd.f32 %v1496, %v1754
  %1756 = vdwg.mxu0
  %1757 = vmatprep.subr.bf16.mxu0 0
  %1758 = vmatpush1.bf16.msra.mxu0 0
  %1759 = vmatprep.subr.bf16.mxu0 0
  %1760 = vmatpush1.bf16.msra.mxu0 0
  %1761 = vmatprep.subr.bf16.mxu0 0
  %1762 = vmatpush1.bf16.msra.mxu0 0
  %1763 = vmatprep.subr.bf16.mxu0 0
  %1764 = vmatpush1.bf16.msra.mxu0 0
  %1765 = vmatprep.subr.bf16.mxu0 0
  %1766 = vmatpush1.bf16.msra.mxu0 0
  %1767 = vmatprep.subr.bf16.mxu0 0
  %1768 = vmatpush1.bf16.msra.mxu0 0
  %1769 = vmatprep.subr.bf16.mxu0 %v1534
  %1770 = vmatpush1.bf16.msra.mxu0 %v1531
  %1771 = vmatprep.subr.bf16.mxu0 %v1461
  %1772 = vmatpush1.bf16.msra.mxu0 %v1460
  %1773 = vmatprep.subr.bf16.mxu0 0
  %1774 = vmatpush2.bf16.msra.mxu0 0
  %1775 = vmatprep.subr.bf16.mxu0 0
  %1776 = vmatpush2.bf16.msra.mxu0 0
  %1777 = vmatprep.subr.bf16.mxu0 0
  %1778 = vmatpush2.bf16.msra.mxu0 0
  %1779 = vmatprep.subr.bf16.mxu0 0
  %1780 = vmatpush2.bf16.msra.mxu0 0
  %1781 = vmatprep.subr.bf16.mxu0 0
  %1782 = vmatpush2.bf16.msra.mxu0 0
  %1783 = vmatprep.subr.bf16.mxu0 0
  %1784 = vmatpush2.bf16.msra.mxu0 0
  %1785 = vmatprep.subr.bf16.mxu0 0
  %1786 = vmatpush2.bf16.msra.mxu0 0
  %1787 = vmatprep.subr.bf16.mxu0 0
  %1788 = vmatpush2.bf16.msra.mxu0 0
  %1789 = vmatprep.mubr.bf16.mxu0 0
  %1790 = vmatmul.mubr.bf16.gmra.mxu0 %v1500
  %v1791 = vpop.f32.mrf.mxu0
  %v1792 = vadd.f32 %v1481, %v1791
  %v1793 = vpop.f32.mrf.mxu0
  %v1794 = vadd.f32 %v1481, %v1793
  %v1795 = vpop.f32.mrf.mxu0
  %v1796 = vadd.f32 %v1486, %v1795
  %v1797 = vpop.f32.mrf.mxu0
  %v1798 = vadd.f32 %v1486, %v1797
  %1799 = vmatprep.mubr.bf16.mxu0 0
  %1800 = vmatmul.mubr.bf16.gmra.mxu0 %v1503
  %v1801 = vpop.f32.mrf.mxu0
  %v1802 = vadd.f32 %v1491, %v1801
  %v1803 = vpop.f32.mrf.mxu0
  %v1804 = vadd.f32 %v1491, %v1803
  %v1805 = vpop.f32.mrf.mxu0
  %v1806 = vadd.f32 %v1496, %v1805
  %v1807 = vpop.f32.mrf.mxu0
  %v1808 = vadd.f32 %v1496, %v1807
  %1809 = vdwg.mxu0
  %1810 = vmatprep.subr.bf16.mxu0 0
  %1811 = vmatpush1.bf16.msra.mxu0 0
  %1812 = vmatprep.subr.bf16.mxu0 0
  %1813 = vmatpush1.bf16.msra.mxu0 0
  %1814 = vmatprep.subr.bf16.mxu0 0
  %1815 = vmatpush1.bf16.msra.mxu0 0
  %1816 = vmatprep.subr.bf16.mxu0 0
  %1817 = vmatpush1.bf16.msra.mxu0 0
  %1818 = vmatprep.subr.bf16.mxu0 0
  %1819 = vmatpush1.bf16.msra.mxu0 0
  %1820 = vmatprep.subr.bf16.mxu0 0
  %1821 = vmatpush1.bf16.msra.mxu0 0
  %1822 = vmatprep.subr.bf16.mxu0 %v1540
  %1823 = vmatpush1.bf16.msra.mxu0 %v1537
  %1824 = vmatprep.subr.bf16.mxu0 %v1463
  %1825 = vmatpush1.bf16.msra.mxu0 %v1462
  %1826 = vmatprep.subr.bf16.mxu0 0
  %1827 = vmatpush2.bf16.msra.mxu0 0
  %1828 = vmatprep.subr.bf16.mxu0 0
  %1829 = vmatpush2.bf16.msra.mxu0 0
  %1830 = vmatprep.subr.bf16.mxu0 0
  %1831 = vmatpush2.bf16.msra.mxu0 0
  %1832 = vmatprep.subr.bf16.mxu0 0
  %1833 = vmatpush2.bf16.msra.mxu0 0
  %1834 = vmatprep.subr.bf16.mxu0 0
  %1835 = vmatpush2.bf16.msra.mxu0 0
  %1836 = vmatprep.subr.bf16.mxu0 0
  %1837 = vmatpush2.bf16.msra.mxu0 0
  %1838 = vmatprep.subr.bf16.mxu0 0
  %1839 = vmatpush2.bf16.msra.mxu0 0
  %1840 = vmatprep.subr.bf16.mxu0 0
  %1841 = vmatpush2.bf16.msra.mxu0 0
  %1842 = vmatprep.mubr.bf16.mxu0 0
  %1843 = vmatmul.mubr.bf16.gmra.mxu0 %v1500
  %v1844 = vpop.f32.mrf.mxu0
  %v1845 = vadd.f32 %v1481, %v1844
  %v1846 = vpop.f32.mrf.mxu0
  %v1847 = vadd.f32 %v1481, %v1846
  %v1848 = vpop.f32.mrf.mxu0
  %v1849 = vadd.f32 %v1486, %v1848
  %v1850 = vpop.f32.mrf.mxu0
  %v1851 = vadd.f32 %v1486, %v1850
  %1852 = vmatprep.mubr.bf16.mxu0 0
  %1853 = vmatmul.mubr.bf16.gmra.mxu0 %v1503
  %v1854 = vpop.f32.mrf.mxu0
  %v1855 = vadd.f32 %v1491, %v1854
  %v1856 = vpop.f32.mrf.mxu0
  %v1857 = vadd.f32 %v1491, %v1856
  %v1858 = vpop.f32.mrf.mxu0
  %v1859 = vadd.f32 %v1496, %v1858
  %v1860 = vpop.f32.mrf.mxu0
  %v1861 = vadd.f32 %v1496, %v1860
  %1862 = vdwg.mxu0
  %1863 = vmatprep.subr.bf16.mxu0 0
  %1864 = vmatpush1.bf16.msra.mxu0 0
  %1865 = vmatprep.subr.bf16.mxu0 0
  %1866 = vmatpush1.bf16.msra.mxu0 0
  %1867 = vmatprep.subr.bf16.mxu0 0
  %1868 = vmatpush1.bf16.msra.mxu0 0
  %1869 = vmatprep.subr.bf16.mxu0 0
  %1870 = vmatpush1.bf16.msra.mxu0 0
  %1871 = vmatprep.subr.bf16.mxu0 0
  %1872 = vmatpush1.bf16.msra.mxu0 0
  %1873 = vmatprep.subr.bf16.mxu0 0
  %1874 = vmatpush1.bf16.msra.mxu0 0
  %1875 = vmatprep.subr.bf16.mxu0 0
  %1876 = vmatpush1.bf16.msra.mxu0 %v1543
  %1877 = vmatprep.subr.bf16.mxu0 0
  %1878 = vmatpush1.bf16.msra.mxu0 %v1464
  %1879 = vmatprep.subr.bf16.mxu0 0
  %1880 = vmatpush2.bf16.msra.mxu0 0
  %1881 = vmatprep.subr.bf16.mxu0 0
  %1882 = vmatpush2.bf16.msra.mxu0 0
  %1883 = vmatprep.subr.bf16.mxu0 0
  %1884 = vmatpush2.bf16.msra.mxu0 0
  %1885 = vmatprep.subr.bf16.mxu0 0
  %1886 = vmatpush2.bf16.msra.mxu0 0
  %1887 = vmatprep.subr.bf16.mxu0 0
  %1888 = vmatpush2.bf16.msra.mxu0 0
  %1889 = vmatprep.subr.bf16.mxu0 0
  %1890 = vmatpush2.bf16.msra.mxu0 0
  %1891 = vmatprep.subr.bf16.mxu0 0
  %1892 = vmatpush2.bf16.msra.mxu0 0
  %1893 = vmatprep.subr.bf16.mxu0 0
  %1894 = vmatpush2.bf16.msra.mxu0 0
  %1895 = vmatprep.mubr.bf16.mxu0 0
  %1896 = vmatmul.mubr.bf16.gmra.mxu0 %v1500
  %v1897 = vpop.f32.mrf.mxu0
  %v1898 = vadd.f32 %v1481, %v1897
  %v1899 = vpop.f32.mrf.mxu0
  %v1900 = vpop.f32.mrf.mxu0
  %v1901 = vadd.f32 %v1486, %v1900
  %v1902 = vpop.f32.mrf.mxu0
  %1903 = vmatprep.mubr.bf16.mxu0 0
  %1904 = vmatmul.mubr.bf16.gmra.mxu0 %v1503
  %v1905 = vpop.f32.mrf.mxu0
  %v1906 = vadd.f32 %v1491, %v1905
  %v1907 = vpop.f32.mrf.mxu0
  %v1908 = vpop.f32.mrf.mxu0
  %v1909 = vadd.f32 %v1496, %v1908
  %v1910 = vpop.f32.mrf.mxu0
  %1911 = vdwg.mxu0
  %vm1912 = vcmp.ge.s32.totalorder %v316, 1
  %vm1913 = vcmp.ge.s32.totalorder %v317, 1
  %vm1914 = vcmp.ge.s32.totalorder %v318, 1
  %vm1915 = vcmp.ge.s32.totalorder %v319, 1
  %vm1916 = vcmp.ge.s32.totalorder %v320, 1
  %vm1917 = vcmp.ge.s32.totalorder %v321, 1
  %vm1918 = vcmp.ge.s32.totalorder %v322, 1
  %vm1919 = vcmp.ge.s32.totalorder %v323, 1
  %vm1920 = vcmp.ge.s32.totalorder %v324, 1
  %vm1921 = vcmp.ge.s32.totalorder %v325, 1
  %vm1922 = vcmp.ge.s32.totalorder %v326, 1
  %vm1923 = vcmp.ge.s32.totalorder %v327, 1
  %vm1924 = vcmp.ge.s32.totalorder %v328, 1
  %vm1925 = vcmp.le.s32.totalorder %v316, 38
  %vm1926 = vcmp.le.s32.totalorder %v317, 38
  %vm1927 = vcmp.le.s32.totalorder %v318, 38
  %vm1928 = vcmp.le.s32.totalorder %v319, 38
  %vm1929 = vcmp.le.s32.totalorder %v320, 38
  %vm1930 = vcmp.le.s32.totalorder %v321, 38
  %vm1931 = vcmp.le.s32.totalorder %v322, 38
  %vm1932 = vcmp.le.s32.totalorder %v323, 38
  %vm1933 = vcmp.le.s32.totalorder %v324, 38
  %vm1934 = vcmp.le.s32.totalorder %v325, 38
  %vm1935 = vcmp.le.s32.totalorder %v326, 38
  %vm1936 = vcmp.le.s32.totalorder %v327, 38
  %vm1937 = vcmp.le.s32.totalorder %v328, 38
  %vm1938 = vmand %vm1912, %vm1925
  %vm1939 = vmand %vm1913, %vm1926
  %vm1940 = vmand %vm1914, %vm1927
  %vm1941 = vmand %vm1915, %vm1928
  %vm1942 = vmand %vm1916, %vm1929
  %vm1943 = vmand %vm1917, %vm1930
  %vm1944 = vmand %vm1918, %vm1931
  %vm1945 = vmand %vm1919, %vm1932
  %vm1946 = vmand %vm1920, %vm1933
  %vm1947 = vmand %vm1921, %vm1934
  %vm1948 = vmand %vm1922, %vm1935
  %vm1949 = vmand %vm1923, %vm1936
  %vm1950 = vmand %vm1924, %vm1937
  %vm1951 = vcmp.ge.s32.totalorder %v342, 1
  %vm1952 = vcmp.ge.s32.totalorder %v343, 1
  %vm1953 = vcmp.ge.s32.totalorder %v344, 1
  %vm1954 = vcmp.ge.s32.totalorder %v345, 1
  %vm1955 = vcmp.ge.s32.totalorder %v346, 1
  %vm1956 = vcmp.ge.s32.totalorder %v347, 1
  %vm1957 = vcmp.ge.s32.totalorder %v348, 1
  %vm1958 = vcmp.ge.s32.totalorder %v349, 1
  %vm1959 = vcmp.ge.s32.totalorder %v350, 1
  %vm1960 = vcmp.ge.s32.totalorder %v351, 1
  %vm1961 = vcmp.ge.s32.totalorder %v352, 1
  %vm1962 = vcmp.ge.s32.totalorder %v353, 1
  %vm1963 = vcmp.ge.s32.totalorder %v354, 1
  %vm1964 = vmand %vm1938, %vm1951
  %vm1965 = vmand %vm1939, %vm1952
  %vm1966 = vmand %vm1940, %vm1953
  %vm1967 = vmand %vm1941, %vm1954
  %vm1968 = vmand %vm1942, %vm1955
  %vm1969 = vmand %vm1943, %vm1956
  %vm1970 = vmand %vm1944, %vm1957
  %vm1971 = vmand %vm1945, %vm1958
  %vm1972 = vmand %vm1946, %vm1959
  %vm1973 = vmand %vm1947, %vm1960
  %vm1974 = vmand %vm1948, %vm1961
  %vm1975 = vmand %vm1949, %vm1962
  %vm1976 = vmand %vm1950, %vm1963
  %vm1977 = vcmp.le.s32.totalorder %v342, 38
  %vm1978 = vcmp.le.s32.totalorder %v343, 38
  %vm1979 = vcmp.le.s32.totalorder %v344, 38
  %vm1980 = vcmp.le.s32.totalorder %v345, 38
  %vm1981 = vcmp.le.s32.totalorder %v346, 38
  %vm1982 = vcmp.le.s32.totalorder %v347, 38
  %vm1983 = vcmp.le.s32.totalorder %v348, 38
  %vm1984 = vcmp.le.s32.totalorder %v349, 38
  %vm1985 = vcmp.le.s32.totalorder %v350, 38
  %vm1986 = vcmp.le.s32.totalorder %v351, 38
  %vm1987 = vcmp.le.s32.totalorder %v352, 38
  %vm1988 = vcmp.le.s32.totalorder %v353, 38
  %vm1989 = vcmp.le.s32.totalorder %v354, 38
  %vm1990 = vmand %vm1964, %vm1977
  %vm1991 = vmand %vm1965, %vm1978
  %vm1992 = vmand %vm1966, %vm1979
  %vm1993 = vmand %vm1967, %vm1980
  %vm1994 = vmand %vm1968, %vm1981
  %vm1995 = vmand %vm1969, %vm1982
  %vm1996 = vmand %vm1970, %vm1983
  %vm1997 = vmand %vm1971, %vm1984
  %vm1998 = vmand %vm1972, %vm1985
  %vm1999 = vmand %vm1973, %vm1986
  %vm2000 = vmand %vm1974, %vm1987
  %vm2001 = vmand %vm1975, %vm1988
  %vm2002 = vmand %vm1976, %vm1989
  %v2003 = vsel %vm1990, 1, 0
  %v2004 = vsel %vm1991, 1, 0
  %v2005 = vsel %vm1992, 1, 0
  %v2006 = vsel %vm1993, 1, 0
  %v2007 = vsel %vm1994, 1, 0
  %v2008 = vsel %vm1995, 1, 0
  %v2009 = vsel %vm1996, 1, 0
  %v2010 = vsel %vm1997, 1, 0
  %v2011 = vsel %vm1998, 1, 0
  %v2012 = vsel %vm1999, 1, 0
  %v2013 = vsel %vm2000, 1, 0
  %v2014 = vsel %vm2001, 1, 0
  %v2015 = vsel %vm2002, 1, 0
  %v2016 = vcvt.s32.f32 %v2003
  %v2017 = vcvt.s32.f32 %v2004
  %v2018 = vcvt.s32.f32 %v2005
  %v2019 = vcvt.s32.f32 %v2006
  %v2020 = vcvt.s32.f32 %v2007
  %v2021 = vcvt.s32.f32 %v2008
  %v2022 = vcvt.s32.f32 %v2009
  %v2023 = vcvt.s32.f32 %v2010
  %v2024 = vcvt.s32.f32 %v2011
  %v2025 = vcvt.s32.f32 %v2012
  %v2026 = vcvt.s32.f32 %v2013
  %v2027 = vcvt.s32.f32 %v2014
  %v2028 = vcvt.s32.f32 %v2015
  %v2029 = vmul.f32 %v1580, %v2016
  %v2030 = vmul.f32 %v1582, %v2017
  %v2031 = vmul.f32 %v1633, %v2018
  %v2032 = vmul.f32 %v1635, %v2019
  %v2033 = vmul.f32 %v1686, %v2020
  %v2034 = vmul.f32 %v1688, %v2021
  %v2035 = vmul.f32 %v1739, %v2022
  %v2036 = vmul.f32 %v1741, %v2023
  %v2037 = vmul.f32 %v1792, %v2024
  %v2038 = vmul.f32 %v1794, %v2025
  %v2039 = vmul.f32 %v1845, %v2026
  %v2040 = vmul.f32 %v1847, %v2027
  %v2041 = vmul.f32 %v1898, %v2028
  %v2042 = vmul.f32 %v1584, %v2016
  %v2043 = vmul.f32 %v1586, %v2017
  %v2044 = vmul.f32 %v1637, %v2018
  %v2045 = vmul.f32 %v1639, %v2019
  %v2046 = vmul.f32 %v1690, %v2020
  %v2047 = vmul.f32 %v1692, %v2021
  %v2048 = vmul.f32 %v1743, %v2022
  %v2049 = vmul.f32 %v1745, %v2023
  %v2050 = vmul.f32 %v1796, %v2024
  %v2051 = vmul.f32 %v1798, %v2025
  %v2052 = vmul.f32 %v1849, %v2026
  %v2053 = vmul.f32 %v1851, %v2027
  %v2054 = vmul.f32 %v1901, %v2028
  %v2055 = vmul.f32 %v1590, %v2016
  %v2056 = vmul.f32 %v1592, %v2017
  %v2057 = vmul.f32 %v1643, %v2018
  %v2058 = vmul.f32 %v1645, %v2019
  %v2059 = vmul.f32 %v1696, %v2020
  %v2060 = vmul.f32 %v1698, %v2021
  %v2061 = vmul.f32 %v1749, %v2022
  %v2062 = vmul.f32 %v1751, %v2023
  %v2063 = vmul.f32 %v1802, %v2024
  %v2064 = vmul.f32 %v1804, %v2025
  %v2065 = vmul.f32 %v1855, %v2026
  %v2066 = vmul.f32 %v1857, %v2027
  %v2067 = vmul.f32 %v1906, %v2028
  %v2068 = vmul.f32 %v1594, %v2016
  %v2069 = vmul.f32 %v1596, %v2017
  %v2070 = vmul.f32 %v1647, %v2018
  %v2071 = vmul.f32 %v1649, %v2019
  %v2072 = vmul.f32 %v1700, %v2020
  %v2073 = vmul.f32 %v1702, %v2021
  %v2074 = vmul.f32 %v1753, %v2022
  %v2075 = vmul.f32 %v1755, %v2023
  %v2076 = vmul.f32 %v1806, %v2024
  %v2077 = vmul.f32 %v1808, %v2025
  %v2078 = vmul.f32 %v1859, %v2026
  %v2079 = vmul.f32 %v1861, %v2027
  %v2080 = vmul.f32 %v1909, %v2028
  %v2081 = vld [vmem:[%s1 + $0x40] sm:$0xff]
  %v2082 = vld [vmem:[%s1 + $0x48] sm:$0xff]
  %v2083 = vld [vmem:[%s1 + $0x50] sm:$0xff]
  %v2084 = vld [vmem:[%s1 + $0x58] sm:$0xff]
  %v2085 = vld [vmem:[%s1 + $0x60] sm:$0xff]
  %v2086 = vld [vmem:[%s1 + $0x68] sm:$0x7]
  %v2087 = vpack.c.bf16 %v2082, %v2081
  %v2088 = vpack.c.bf16 %v2084, %v2083
  %v2089 = vpack.c.bf16 %v2086, %v2085
  %v2090 = vpack.c.bf16 %v2042, %v2029
  %v2091 = vpack.c.bf16 %v2043, %v2030
  %v2092 = vpack.c.bf16 %v2044, %v2031
  %v2093 = vpack.c.bf16 %v2045, %v2032
  %v2094 = vpack.c.bf16 %v2046, %v2033
  %v2095 = vpack.c.bf16 %v2047, %v2034
  %v2096 = vpack.c.bf16 %v2048, %v2035
  %v2097 = vpack.c.bf16 %v2049, %v2036
  %v2098 = vpack.c.bf16 %v2050, %v2037
  %v2099 = vpack.c.bf16 %v2051, %v2038
  %v2100 = vpack.c.bf16 %v2052, %v2039
  %v2101 = vpack.c.bf16 %v2053, %v2040
  %v2102 = vpack.c.bf16 %v2054, %v2041
  %v2103 = vpack.c.bf16 %v2068, %v2055
  %v2104 = vpack.c.bf16 %v2069, %v2056
  %v2105 = vpack.c.bf16 %v2070, %v2057
  %v2106 = vpack.c.bf16 %v2071, %v2058
  %v2107 = vpack.c.bf16 %v2072, %v2059
  %v2108 = vpack.c.bf16 %v2073, %v2060
  %v2109 = vpack.c.bf16 %v2074, %v2061
  %v2110 = vpack.c.bf16 %v2075, %v2062
  %v2111 = vpack.c.bf16 %v2076, %v2063
  %v2112 = vpack.c.bf16 %v2077, %v2064
  %v2113 = vpack.c.bf16 %v2078, %v2065
  %v2114 = vpack.c.bf16 %v2079, %v2066
  %v2115 = vpack.c.bf16 %v2080, %v2067
  %2117 = vset.pattern.permute.xlu0 32
  %2118 = vperm.xlu0 %2117, %v2081
  %v2119 = vpop.permute.xlu0 %2118
  %2122 = vset.pattern.permute.xlu0 32
  %2123 = vperm.xlu0 %2122, %v2082
  %v2124 = vpop.permute.xlu0 %2123
  %2127 = vset.pattern.permute.xlu0 32
  %2128 = vperm.xlu0 %2127, %v2083
  %v2129 = vpop.permute.xlu0 %2128
  %2132 = vset.pattern.permute.xlu0 32
  %2133 = vperm.xlu0 %2132, %v2084
  %v2134 = vpop.permute.xlu0 %2133
  %2137 = vset.pattern.permute.xlu0 32
  %2138 = vperm.xlu0 %2137, %v2085
  %v2139 = vpop.permute.xlu0 %2138
  %2142 = vset.pattern.permute.xlu0 32
  %2143 = vperm.xlu0 %2142, %v2086
  %v2144 = vpop.permute.xlu0 %2143
  %vm2146 = vcmask 261120
  %v2148 = vsel %vm2146, %v2087, 0
  %v2151 = vsel %vm2146, %v2088, 0
  %v2154 = vsel %vm2146, %v2089, 0
  %2156 = vmatprep.subr.bf16.mxu0 0
  %2157 = vmatpush1.bf16.msra.mxu0 0
  %2158 = vmatprep.subr.bf16.mxu0 0
  %2159 = vmatpush1.bf16.msra.mxu0 0
  %2160 = vmatprep.subr.bf16.mxu0 0
  %2161 = vmatpush1.bf16.msra.mxu0 0
  %2162 = vmatprep.subr.bf16.mxu0 0
  %2163 = vmatpush1.bf16.msra.mxu0 0
  %2164 = vmatprep.subr.bf16.mxu0 0
  %2165 = vmatpush1.bf16.msra.mxu0 0
  %2166 = vmatprep.subr.bf16.mxu0 0
  %2167 = vmatpush1.bf16.msra.mxu0 0
  %2168 = vmatprep.subr.bf16.mxu0 %v2104
  %2169 = vmatpush1.bf16.msra.mxu0 %v2103
  %2170 = vmatprep.subr.bf16.mxu0 %v2091
  %2171 = vmatpush1.bf16.msra.mxu0 %v2090
  %2172 = vmatprep.subr.bf16.mxu0 0
  %2173 = vmatpush2.bf16.msra.mxu0 0
  %2174 = vmatprep.subr.bf16.mxu0 0
  %2175 = vmatpush2.bf16.msra.mxu0 0
  %2176 = vmatprep.subr.bf16.mxu0 0
  %2177 = vmatpush2.bf16.msra.mxu0 0
  %2178 = vmatprep.subr.bf16.mxu0 0
  %2179 = vmatpush2.bf16.msra.mxu0 0
  %2180 = vmatprep.subr.bf16.mxu0 0
  %2181 = vmatpush2.bf16.msra.mxu0 0
  %2182 = vmatprep.subr.bf16.mxu0 0
  %2183 = vmatpush2.bf16.msra.mxu0 0
  %2184 = vmatprep.subr.bf16.mxu0 0
  %2185 = vmatpush2.bf16.msra.mxu0 0
  %2186 = vmatprep.subr.bf16.mxu0 0
  %2187 = vmatpush2.bf16.msra.mxu0 0
  %2188 = vmatprep.mubr.bf16.mxu0 0
  %2189 = vmatmul.mubr.bf16.gmra.mxu0 %v2148
  %v2190 = vpop.f32.mrf.mxu0
  %v2191 = vadd.f32 %v2119, %v2190
  %v2192 = vpop.f32.mrf.mxu0
  %v2193 = vadd.f32 %v2119, %v2192
  %v2194 = vpop.f32.mrf.mxu0
  %v2195 = vadd.f32 %v2124, %v2194
  %v2196 = vpop.f32.mrf.mxu0
  %v2197 = vadd.f32 %v2124, %v2196
  %2198 = vmatprep.mubr.bf16.mxu0 0
  %2199 = vmatmul.mubr.bf16.gmra.mxu0 %v2151
  %v2200 = vpop.f32.mrf.mxu0
  %v2201 = vadd.f32 %v2129, %v2200
  %v2202 = vpop.f32.mrf.mxu0
  %v2203 = vadd.f32 %v2129, %v2202
  %v2204 = vpop.f32.mrf.mxu0
  %v2205 = vadd.f32 %v2134, %v2204
  %v2206 = vpop.f32.mrf.mxu0
  %v2207 = vadd.f32 %v2134, %v2206
  %2208 = vmatprep.mubr.bf16.mxu0 0
  %2209 = vmatmul.mubr.bf16.gmra.mxu0 %v2154
  %v2210 = vpop.f32.mrf.mxu0
  %v2211 = vadd.f32 %v2139, %v2210
  %v2212 = vpop.f32.mrf.mxu0
  %v2213 = vadd.f32 %v2139, %v2212
  %v2214 = vpop.f32.mrf.mxu0
  %v2215 = vadd.f32 %v2144, %v2214
  %v2216 = vpop.f32.mrf.mxu0
  %v2217 = vadd.f32 %v2144, %v2216
  %2218 = vdwg.mxu0
  %2219 = vmatprep.subr.bf16.mxu0 0
  %2220 = vmatpush1.bf16.msra.mxu0 0
  %2221 = vmatprep.subr.bf16.mxu0 0
  %2222 = vmatpush1.bf16.msra.mxu0 0
  %2223 = vmatprep.subr.bf16.mxu0 0
  %2224 = vmatpush1.bf16.msra.mxu0 0
  %2225 = vmatprep.subr.bf16.mxu0 0
  %2226 = vmatpush1.bf16.msra.mxu0 0
  %2227 = vmatprep.subr.bf16.mxu0 0
  %2228 = vmatpush1.bf16.msra.mxu0 0
  %2229 = vmatprep.subr.bf16.mxu0 0
  %2230 = vmatpush1.bf16.msra.mxu0 0
  %2231 = vmatprep.subr.bf16.mxu0 %v2106
  %2232 = vmatpush1.bf16.msra.mxu0 %v2105
  %2233 = vmatprep.subr.bf16.mxu0 %v2093
  %2234 = vmatpush1.bf16.msra.mxu0 %v2092
  %2235 = vmatprep.subr.bf16.mxu0 0
  %2236 = vmatpush2.bf16.msra.mxu0 0
  %2237 = vmatprep.subr.bf16.mxu0 0
  %2238 = vmatpush2.bf16.msra.mxu0 0
  %2239 = vmatprep.subr.bf16.mxu0 0
  %2240 = vmatpush2.bf16.msra.mxu0 0
  %2241 = vmatprep.subr.bf16.mxu0 0
  %2242 = vmatpush2.bf16.msra.mxu0 0
  %2243 = vmatprep.subr.bf16.mxu0 0
  %2244 = vmatpush2.bf16.msra.mxu0 0
  %2245 = vmatprep.subr.bf16.mxu0 0
  %2246 = vmatpush2.bf16.msra.mxu0 0
  %2247 = vmatprep.subr.bf16.mxu0 0
  %2248 = vmatpush2.bf16.msra.mxu0 0
  %2249 = vmatprep.subr.bf16.mxu0 0
  %2250 = vmatpush2.bf16.msra.mxu0 0
  %2251 = vmatprep.mubr.bf16.mxu0 0
  %2252 = vmatmul.mubr.bf16.gmra.mxu0 %v2148
  %v2253 = vpop.f32.mrf.mxu0
  %v2254 = vadd.f32 %v2119, %v2253
  %v2255 = vpop.f32.mrf.mxu0
  %v2256 = vadd.f32 %v2119, %v2255
  %v2257 = vpop.f32.mrf.mxu0
  %v2258 = vadd.f32 %v2124, %v2257
  %v2259 = vpop.f32.mrf.mxu0
  %v2260 = vadd.f32 %v2124, %v2259
  %2261 = vmatprep.mubr.bf16.mxu0 0
  %2262 = vmatmul.mubr.bf16.gmra.mxu0 %v2151
  %v2263 = vpop.f32.mrf.mxu0
  %v2264 = vadd.f32 %v2129, %v2263
  %v2265 = vpop.f32.mrf.mxu0
  %v2266 = vadd.f32 %v2129, %v2265
  %v2267 = vpop.f32.mrf.mxu0
  %v2268 = vadd.f32 %v2134, %v2267
  %v2269 = vpop.f32.mrf.mxu0
  %v2270 = vadd.f32 %v2134, %v2269
  %2271 = vmatprep.mubr.bf16.mxu0 0
  %2272 = vmatmul.mubr.bf16.gmra.mxu0 %v2154
  %v2273 = vpop.f32.mrf.mxu0
  %v2274 = vadd.f32 %v2139, %v2273
  %v2275 = vpop.f32.mrf.mxu0
  %v2276 = vadd.f32 %v2139, %v2275
  %v2277 = vpop.f32.mrf.mxu0
  %v2278 = vadd.f32 %v2144, %v2277
  %v2279 = vpop.f32.mrf.mxu0
  %v2280 = vadd.f32 %v2144, %v2279
  %2281 = vdwg.mxu0
  %2282 = vmatprep.subr.bf16.mxu0 0
  %2283 = vmatpush1.bf16.msra.mxu0 0
  %2284 = vmatprep.subr.bf16.mxu0 0
  %2285 = vmatpush1.bf16.msra.mxu0 0
  %2286 = vmatprep.subr.bf16.mxu0 0
  %2287 = vmatpush1.bf16.msra.mxu0 0
  %2288 = vmatprep.subr.bf16.mxu0 0
  %2289 = vmatpush1.bf16.msra.mxu0 0
  %2290 = vmatprep.subr.bf16.mxu0 0
  %2291 = vmatpush1.bf16.msra.mxu0 0
  %2292 = vmatprep.subr.bf16.mxu0 0
  %2293 = vmatpush1.bf16.msra.mxu0 0
  %2294 = vmatprep.subr.bf16.mxu0 %v2108
  %2295 = vmatpush1.bf16.msra.mxu0 %v2107
  %2296 = vmatprep.subr.bf16.mxu0 %v2095
  %2297 = vmatpush1.bf16.msra.mxu0 %v2094
  %2298 = vmatprep.subr.bf16.mxu0 0
  %2299 = vmatpush2.bf16.msra.mxu0 0
  %2300 = vmatprep.subr.bf16.mxu0 0
  %2301 = vmatpush2.bf16.msra.mxu0 0
  %2302 = vmatprep.subr.bf16.mxu0 0
  %2303 = vmatpush2.bf16.msra.mxu0 0
  %2304 = vmatprep.subr.bf16.mxu0 0
  %2305 = vmatpush2.bf16.msra.mxu0 0
  %2306 = vmatprep.subr.bf16.mxu0 0
  %2307 = vmatpush2.bf16.msra.mxu0 0
  %2308 = vmatprep.subr.bf16.mxu0 0
  %2309 = vmatpush2.bf16.msra.mxu0 0
  %2310 = vmatprep.subr.bf16.mxu0 0
  %2311 = vmatpush2.bf16.msra.mxu0 0
  %2312 = vmatprep.subr.bf16.mxu0 0
  %2313 = vmatpush2.bf16.msra.mxu0 0
  %2314 = vmatprep.mubr.bf16.mxu0 0
  %2315 = vmatmul.mubr.bf16.gmra.mxu0 %v2148
  %v2316 = vpop.f32.mrf.mxu0
  %v2317 = vadd.f32 %v2119, %v2316
  %v2318 = vpop.f32.mrf.mxu0
  %v2319 = vadd.f32 %v2119, %v2318
  %v2320 = vpop.f32.mrf.mxu0
  %v2321 = vadd.f32 %v2124, %v2320
  %v2322 = vpop.f32.mrf.mxu0
  %v2323 = vadd.f32 %v2124, %v2322
  %2324 = vmatprep.mubr.bf16.mxu0 0
  %2325 = vmatmul.mubr.bf16.gmra.mxu0 %v2151
  %v2326 = vpop.f32.mrf.mxu0
  %v2327 = vadd.f32 %v2129, %v2326
  %v2328 = vpop.f32.mrf.mxu0
  %v2329 = vadd.f32 %v2129, %v2328
  %v2330 = vpop.f32.mrf.mxu0
  %v2331 = vadd.f32 %v2134, %v2330
  %v2332 = vpop.f32.mrf.mxu0
  %v2333 = vadd.f32 %v2134, %v2332
  %2334 = vmatprep.mubr.bf16.mxu0 0
  %2335 = vmatmul.mubr.bf16.gmra.mxu0 %v2154
  %v2336 = vpop.f32.mrf.mxu0
  %v2337 = vadd.f32 %v2139, %v2336
  %v2338 = vpop.f32.mrf.mxu0
  %v2339 = vadd.f32 %v2139, %v2338
  %v2340 = vpop.f32.mrf.mxu0
  %v2341 = vadd.f32 %v2144, %v2340
  %v2342 = vpop.f32.mrf.mxu0
  %v2343 = vadd.f32 %v2144, %v2342
  %2344 = vdwg.mxu0
  %2345 = vmatprep.subr.bf16.mxu0 0
  %2346 = vmatpush1.bf16.msra.mxu0 0
  %2347 = vmatprep.subr.bf16.mxu0 0
  %2348 = vmatpush1.bf16.msra.mxu0 0
  %2349 = vmatprep.subr.bf16.mxu0 0
  %2350 = vmatpush1.bf16.msra.mxu0 0
  %2351 = vmatprep.subr.bf16.mxu0 0
  %2352 = vmatpush1.bf16.msra.mxu0 0
  %2353 = vmatprep.subr.bf16.mxu0 0
  %2354 = vmatpush1.bf16.msra.mxu0 0
  %2355 = vmatprep.subr.bf16.mxu0 0
  %2356 = vmatpush1.bf16.msra.mxu0 0
  %2357 = vmatprep.subr.bf16.mxu0 %v2110
  %2358 = vmatpush1.bf16.msra.mxu0 %v2109
  %2359 = vmatprep.subr.bf16.mxu0 %v2097
  %2360 = vmatpush1.bf16.msra.mxu0 %v2096
  %2361 = vmatprep.subr.bf16.mxu0 0
  %2362 = vmatpush2.bf16.msra.mxu0 0
  %2363 = vmatprep.subr.bf16.mxu0 0
  %2364 = vmatpush2.bf16.msra.mxu0 0
  %2365 = vmatprep.subr.bf16.mxu0 0
  %2366 = vmatpush2.bf16.msra.mxu0 0
  %2367 = vmatprep.subr.bf16.mxu0 0
  %2368 = vmatpush2.bf16.msra.mxu0 0
  %2369 = vmatprep.subr.bf16.mxu0 0
  %2370 = vmatpush2.bf16.msra.mxu0 0
  %2371 = vmatprep.subr.bf16.mxu0 0
  %2372 = vmatpush2.bf16.msra.mxu0 0
  %2373 = vmatprep.subr.bf16.mxu0 0
  %2374 = vmatpush2.bf16.msra.mxu0 0
  %2375 = vmatprep.subr.bf16.mxu0 0
  %2376 = vmatpush2.bf16.msra.mxu0 0
  %2377 = vmatprep.mubr.bf16.mxu0 0
  %2378 = vmatmul.mubr.bf16.gmra.mxu0 %v2148
  %v2379 = vpop.f32.mrf.mxu0
  %v2380 = vadd.f32 %v2119, %v2379
  %v2381 = vpop.f32.mrf.mxu0
  %v2382 = vadd.f32 %v2119, %v2381
  %v2383 = vpop.f32.mrf.mxu0
  %v2384 = vadd.f32 %v2124, %v2383
  %v2385 = vpop.f32.mrf.mxu0
  %v2386 = vadd.f32 %v2124, %v2385
  %2387 = vmatprep.mubr.bf16.mxu0 0
  %2388 = vmatmul.mubr.bf16.gmra.mxu0 %v2151
  %v2389 = vpop.f32.mrf.mxu0
  %v2390 = vadd.f32 %v2129, %v2389
  %v2391 = vpop.f32.mrf.mxu0
  %v2392 = vadd.f32 %v2129, %v2391
  %v2393 = vpop.f32.mrf.mxu0
  %v2394 = vadd.f32 %v2134, %v2393
  %v2395 = vpop.f32.mrf.mxu0
  %v2396 = vadd.f32 %v2134, %v2395
  %2397 = vmatprep.mubr.bf16.mxu0 0
  %2398 = vmatmul.mubr.bf16.gmra.mxu0 %v2154
  %v2399 = vpop.f32.mrf.mxu0
  %v2400 = vadd.f32 %v2139, %v2399
  %v2401 = vpop.f32.mrf.mxu0
  %v2402 = vadd.f32 %v2139, %v2401
  %v2403 = vpop.f32.mrf.mxu0
  %v2404 = vadd.f32 %v2144, %v2403
  %v2405 = vpop.f32.mrf.mxu0
  %v2406 = vadd.f32 %v2144, %v2405
  %2407 = vdwg.mxu0
  %2408 = vmatprep.subr.bf16.mxu0 0
  %2409 = vmatpush1.bf16.msra.mxu0 0
  %2410 = vmatprep.subr.bf16.mxu0 0
  %2411 = vmatpush1.bf16.msra.mxu0 0
  %2412 = vmatprep.subr.bf16.mxu0 0
  %2413 = vmatpush1.bf16.msra.mxu0 0
  %2414 = vmatprep.subr.bf16.mxu0 0
  %2415 = vmatpush1.bf16.msra.mxu0 0
  %2416 = vmatprep.subr.bf16.mxu0 0
  %2417 = vmatpush1.bf16.msra.mxu0 0
  %2418 = vmatprep.subr.bf16.mxu0 0
  %2419 = vmatpush1.bf16.msra.mxu0 0
  %2420 = vmatprep.subr.bf16.mxu0 %v2112
  %2421 = vmatpush1.bf16.msra.mxu0 %v2111
  %2422 = vmatprep.subr.bf16.mxu0 %v2099
  %2423 = vmatpush1.bf16.msra.mxu0 %v2098
  %2424 = vmatprep.subr.bf16.mxu0 0
  %2425 = vmatpush2.bf16.msra.mxu0 0
  %2426 = vmatprep.subr.bf16.mxu0 0
  %2427 = vmatpush2.bf16.msra.mxu0 0
  %2428 = vmatprep.subr.bf16.mxu0 0
  %2429 = vmatpush2.bf16.msra.mxu0 0
  %2430 = vmatprep.subr.bf16.mxu0 0
  %2431 = vmatpush2.bf16.msra.mxu0 0
  %2432 = vmatprep.subr.bf16.mxu0 0
  %2433 = vmatpush2.bf16.msra.mxu0 0
  %2434 = vmatprep.subr.bf16.mxu0 0
  %2435 = vmatpush2.bf16.msra.mxu0 0
  %2436 = vmatprep.subr.bf16.mxu0 0
  %2437 = vmatpush2.bf16.msra.mxu0 0
  %2438 = vmatprep.subr.bf16.mxu0 0
  %2439 = vmatpush2.bf16.msra.mxu0 0
  %2440 = vmatprep.mubr.bf16.mxu0 0
  %2441 = vmatmul.mubr.bf16.gmra.mxu0 %v2148
  %v2442 = vpop.f32.mrf.mxu0
  %v2443 = vadd.f32 %v2119, %v2442
  %v2444 = vpop.f32.mrf.mxu0
  %v2445 = vadd.f32 %v2119, %v2444
  %v2446 = vpop.f32.mrf.mxu0
  %v2447 = vadd.f32 %v2124, %v2446
  %v2448 = vpop.f32.mrf.mxu0
  %v2449 = vadd.f32 %v2124, %v2448
  %2450 = vmatprep.mubr.bf16.mxu0 0
  %2451 = vmatmul.mubr.bf16.gmra.mxu0 %v2151
  %v2452 = vpop.f32.mrf.mxu0
  %v2453 = vadd.f32 %v2129, %v2452
  %v2454 = vpop.f32.mrf.mxu0
  %v2455 = vadd.f32 %v2129, %v2454
  %v2456 = vpop.f32.mrf.mxu0
  %v2457 = vadd.f32 %v2134, %v2456
  %v2458 = vpop.f32.mrf.mxu0
  %v2459 = vadd.f32 %v2134, %v2458
  %2460 = vmatprep.mubr.bf16.mxu0 0
  %2461 = vmatmul.mubr.bf16.gmra.mxu0 %v2154
  %v2462 = vpop.f32.mrf.mxu0
  %v2463 = vadd.f32 %v2139, %v2462
  %v2464 = vpop.f32.mrf.mxu0
  %v2465 = vadd.f32 %v2139, %v2464
  %v2466 = vpop.f32.mrf.mxu0
  %v2467 = vadd.f32 %v2144, %v2466
  %v2468 = vpop.f32.mrf.mxu0
  %v2469 = vadd.f32 %v2144, %v2468
  %2470 = vdwg.mxu0
  %2471 = vmatprep.subr.bf16.mxu0 0
  %2472 = vmatpush1.bf16.msra.mxu0 0
  %2473 = vmatprep.subr.bf16.mxu0 0
  %2474 = vmatpush1.bf16.msra.mxu0 0
  %2475 = vmatprep.subr.bf16.mxu0 0
  %2476 = vmatpush1.bf16.msra.mxu0 0
  %2477 = vmatprep.subr.bf16.mxu0 0
  %2478 = vmatpush1.bf16.msra.mxu0 0
  %2479 = vmatprep.subr.bf16.mxu0 0
  %2480 = vmatpush1.bf16.msra.mxu0 0
  %2481 = vmatprep.subr.bf16.mxu0 0
  %2482 = vmatpush1.bf16.msra.mxu0 0
  %2483 = vmatprep.subr.bf16.mxu0 %v2114
  %2484 = vmatpush1.bf16.msra.mxu0 %v2113
  %2485 = vmatprep.subr.bf16.mxu0 %v2101
  %2486 = vmatpush1.bf16.msra.mxu0 %v2100
  %2487 = vmatprep.subr.bf16.mxu0 0
  %2488 = vmatpush2.bf16.msra.mxu0 0
  %2489 = vmatprep.subr.bf16.mxu0 0
  %2490 = vmatpush2.bf16.msra.mxu0 0
  %2491 = vmatprep.subr.bf16.mxu0 0
  %2492 = vmatpush2.bf16.msra.mxu0 0
  %2493 = vmatprep.subr.bf16.mxu0 0
  %2494 = vmatpush2.bf16.msra.mxu0 0
  %2495 = vmatprep.subr.bf16.mxu0 0
  %2496 = vmatpush2.bf16.msra.mxu0 0
  %2497 = vmatprep.subr.bf16.mxu0 0
  %2498 = vmatpush2.bf16.msra.mxu0 0
  %2499 = vmatprep.subr.bf16.mxu0 0
  %2500 = vmatpush2.bf16.msra.mxu0 0
  %2501 = vmatprep.subr.bf16.mxu0 0
  %2502 = vmatpush2.bf16.msra.mxu0 0
  %2503 = vmatprep.mubr.bf16.mxu0 0
  %2504 = vmatmul.mubr.bf16.gmra.mxu0 %v2148
  %v2505 = vpop.f32.mrf.mxu0
  %v2506 = vadd.f32 %v2119, %v2505
  %v2507 = vpop.f32.mrf.mxu0
  %v2508 = vadd.f32 %v2119, %v2507
  %v2509 = vpop.f32.mrf.mxu0
  %v2510 = vadd.f32 %v2124, %v2509
  %v2511 = vpop.f32.mrf.mxu0
  %v2512 = vadd.f32 %v2124, %v2511
  %2513 = vmatprep.mubr.bf16.mxu0 0
  %2514 = vmatmul.mubr.bf16.gmra.mxu0 %v2151
  %v2515 = vpop.f32.mrf.mxu0
  %v2516 = vadd.f32 %v2129, %v2515
  %v2517 = vpop.f32.mrf.mxu0
  %v2518 = vadd.f32 %v2129, %v2517
  %v2519 = vpop.f32.mrf.mxu0
  %v2520 = vadd.f32 %v2134, %v2519
  %v2521 = vpop.f32.mrf.mxu0
  %v2522 = vadd.f32 %v2134, %v2521
  %2523 = vmatprep.mubr.bf16.mxu0 0
  %2524 = vmatmul.mubr.bf16.gmra.mxu0 %v2154
  %v2525 = vpop.f32.mrf.mxu0
  %v2526 = vadd.f32 %v2139, %v2525
  %v2527 = vpop.f32.mrf.mxu0
  %v2528 = vadd.f32 %v2139, %v2527
  %v2529 = vpop.f32.mrf.mxu0
  %v2530 = vadd.f32 %v2144, %v2529
  %v2531 = vpop.f32.mrf.mxu0
  %v2532 = vadd.f32 %v2144, %v2531
  %2533 = vdwg.mxu0
  %2534 = vmatprep.subr.bf16.mxu0 0
  %2535 = vmatpush1.bf16.msra.mxu0 0
  %2536 = vmatprep.subr.bf16.mxu0 0
  %2537 = vmatpush1.bf16.msra.mxu0 0
  %2538 = vmatprep.subr.bf16.mxu0 0
  %2539 = vmatpush1.bf16.msra.mxu0 0
  %2540 = vmatprep.subr.bf16.mxu0 0
  %2541 = vmatpush1.bf16.msra.mxu0 0
  %2542 = vmatprep.subr.bf16.mxu0 0
  %2543 = vmatpush1.bf16.msra.mxu0 0
  %2544 = vmatprep.subr.bf16.mxu0 0
  %2545 = vmatpush1.bf16.msra.mxu0 0
  %2546 = vmatprep.subr.bf16.mxu0 0
  %2547 = vmatpush1.bf16.msra.mxu0 %v2115
  %2548 = vmatprep.subr.bf16.mxu0 0
  %2549 = vmatpush1.bf16.msra.mxu0 %v2102
  %2550 = vmatprep.subr.bf16.mxu0 0
  %2551 = vmatpush2.bf16.msra.mxu0 0
  %2552 = vmatprep.subr.bf16.mxu0 0
  %2553 = vmatpush2.bf16.msra.mxu0 0
  %2554 = vmatprep.subr.bf16.mxu0 0
  %2555 = vmatpush2.bf16.msra.mxu0 0
  %2556 = vmatprep.subr.bf16.mxu0 0
  %2557 = vmatpush2.bf16.msra.mxu0 0
  %2558 = vmatprep.subr.bf16.mxu0 0
  %2559 = vmatpush2.bf16.msra.mxu0 0
  %2560 = vmatprep.subr.bf16.mxu0 0
  %2561 = vmatpush2.bf16.msra.mxu0 0
  %2562 = vmatprep.subr.bf16.mxu0 0
  %2563 = vmatpush2.bf16.msra.mxu0 0
  %2564 = vmatprep.subr.bf16.mxu0 0
  %2565 = vmatpush2.bf16.msra.mxu0 0
  %2566 = vmatprep.mubr.bf16.mxu0 0
  %2567 = vmatmul.mubr.bf16.gmra.mxu0 %v2148
  %v2568 = vpop.f32.mrf.mxu0
  %v2569 = vadd.f32 %v2119, %v2568
  %v2570 = vpop.f32.mrf.mxu0
  %v2571 = vpop.f32.mrf.mxu0
  %v2572 = vadd.f32 %v2124, %v2571
  %v2573 = vpop.f32.mrf.mxu0
  %2574 = vmatprep.mubr.bf16.mxu0 0
  %2575 = vmatmul.mubr.bf16.gmra.mxu0 %v2151
  %v2576 = vpop.f32.mrf.mxu0
  %v2577 = vadd.f32 %v2129, %v2576
  %v2578 = vpop.f32.mrf.mxu0
  %v2579 = vpop.f32.mrf.mxu0
  %v2580 = vadd.f32 %v2134, %v2579
  %v2581 = vpop.f32.mrf.mxu0
  %2582 = vmatprep.mubr.bf16.mxu0 0
  %2583 = vmatmul.mubr.bf16.gmra.mxu0 %v2154
  %v2584 = vpop.f32.mrf.mxu0
  %v2585 = vadd.f32 %v2139, %v2584
  %v2586 = vpop.f32.mrf.mxu0
  %v2587 = vpop.f32.mrf.mxu0
  %v2588 = vadd.f32 %v2144, %v2587
  %v2589 = vpop.f32.mrf.mxu0
  %2590 = vdwg.mxu0
  %v2591 = vtanh.pop %v2191
  %v2592 = vtanh.pop %v2193
  %v2593 = vtanh.pop %v2254
  %v2594 = vtanh.pop %v2256
  %v2595 = vtanh.pop %v2317
  %v2596 = vtanh.pop %v2319
  %v2597 = vtanh.pop %v2380
  %v2598 = vtanh.pop %v2382
  %v2599 = vtanh.pop %v2443
  %v2600 = vtanh.pop %v2445
  %v2601 = vtanh.pop %v2506
  %v2602 = vtanh.pop %v2508
  %v2603 = vtanh.pop %v2569
  %v2604 = vtanh.pop %v2195
  %v2605 = vtanh.pop %v2197
  %v2606 = vtanh.pop %v2258
  %v2607 = vtanh.pop %v2260
  %v2608 = vtanh.pop %v2321
  %v2609 = vtanh.pop %v2323
  %v2610 = vtanh.pop %v2384
  %v2611 = vtanh.pop %v2386
  %v2612 = vtanh.pop %v2447
  %v2613 = vtanh.pop %v2449
  %v2614 = vtanh.pop %v2510
  %v2615 = vtanh.pop %v2512
  %v2616 = vtanh.pop %v2572
  %v2617 = vtanh.pop %v2201
  %v2618 = vtanh.pop %v2203
  %v2619 = vtanh.pop %v2264
  %v2620 = vtanh.pop %v2266
  %v2621 = vtanh.pop %v2327
  %v2622 = vtanh.pop %v2329
  %v2623 = vtanh.pop %v2390
  %v2624 = vtanh.pop %v2392
  %v2625 = vtanh.pop %v2453
  %v2626 = vtanh.pop %v2455
  %v2627 = vtanh.pop %v2516
  %v2628 = vtanh.pop %v2518
  %v2629 = vtanh.pop %v2577
  %v2630 = vtanh.pop %v2205
  %v2631 = vtanh.pop %v2207
  %v2632 = vtanh.pop %v2268
  %v2633 = vtanh.pop %v2270
  %v2634 = vtanh.pop %v2331
  %v2635 = vtanh.pop %v2333
  %v2636 = vtanh.pop %v2394
  %v2637 = vtanh.pop %v2396
  %v2638 = vtanh.pop %v2457
  %v2639 = vtanh.pop %v2459
  %v2640 = vtanh.pop %v2520
  %v2641 = vtanh.pop %v2522
  %v2642 = vtanh.pop %v2580
  %v2643 = vtanh.pop %v2211
  %v2644 = vtanh.pop %v2213
  %v2645 = vtanh.pop %v2274
  %v2646 = vtanh.pop %v2276
  %v2647 = vtanh.pop %v2337
  %v2648 = vtanh.pop %v2339
  %v2649 = vtanh.pop %v2400
  %v2650 = vtanh.pop %v2402
  %v2651 = vtanh.pop %v2463
  %v2652 = vtanh.pop %v2465
  %v2653 = vtanh.pop %v2526
  %v2654 = vtanh.pop %v2528
  %v2655 = vtanh.pop %v2585
  %v2656 = vtanh.pop %v2215
  %v2657 = vtanh.pop %v2217
  %v2658 = vtanh.pop %v2278
  %v2659 = vtanh.pop %v2280
  %v2660 = vtanh.pop %v2341
  %v2661 = vtanh.pop %v2343
  %v2662 = vtanh.pop %v2404
  %v2663 = vtanh.pop %v2406
  %v2664 = vtanh.pop %v2467
  %v2665 = vtanh.pop %v2469
  %v2666 = vtanh.pop %v2530
  %v2667 = vtanh.pop %v2532
  %v2668 = vtanh.pop %v2588
  %2669 = vst [vmem:[%s2] sm:$0xff] %v2591
  %2670 = vst [vmem:[%s2 + $0x8] sm:$0xff] %v2592
  %2671 = vst [vmem:[%s2 + $0x10] sm:$0xff] %v2593
  %2672 = vst [vmem:[%s2 + $0x18] sm:$0xff] %v2594
  %2673 = vst [vmem:[%s2 + $0x20] sm:$0xff] %v2595
  %2674 = vst [vmem:[%s2 + $0x28] sm:$0xff] %v2596
  %2675 = vst [vmem:[%s2 + $0x30] sm:$0xff] %v2597
  %2676 = vst [vmem:[%s2 + $0x38] sm:$0xff] %v2598
  %2677 = vst [vmem:[%s2 + $0x40] sm:$0xff] %v2599
  %2678 = vst [vmem:[%s2 + $0x48] sm:$0xff] %v2600
  %2679 = vst [vmem:[%s2 + $0x50] sm:$0xff] %v2601
  %2680 = vst [vmem:[%s2 + $0x58] sm:$0xff] %v2602
  %vm2681 = vcmask 523264
  %2682 = vst.msk [vmem:[%s2 + $0x60] sm:$0xff] %vm2681, %v2603
  %2683 = vst [vmem:[%s2 + $0x68] sm:$0xff] %v2604
  %2684 = vst [vmem:[%s2 + $0x70] sm:$0xff] %v2605
  %2685 = vst [vmem:[%s2 + $0x78] sm:$0xff] %v2606
  %2686 = vst [vmem:[%s2 + $0x80] sm:$0xff] %v2607
  %2687 = vst [vmem:[%s2 + $0x88] sm:$0xff] %v2608
  %2688 = vst [vmem:[%s2 + $0x90] sm:$0xff] %v2609
  %2689 = vst [vmem:[%s2 + $0x98] sm:$0xff] %v2610
  %2690 = vst [vmem:[%s2 + $0xa0] sm:$0xff] %v2611
  %2691 = vst [vmem:[%s2 + $0xa8] sm:$0xff] %v2612
  %2692 = vst [vmem:[%s2 + $0xb0] sm:$0xff] %v2613
  %2693 = vst [vmem:[%s2 + $0xb8] sm:$0xff] %v2614
  %2694 = vst [vmem:[%s2 + $0xc0] sm:$0xff] %v2615
  %2695 = vst.msk [vmem:[%s2 + $0xc8] sm:$0xff] %vm2681, %v2616
  %2696 = vst [vmem:[%s2 + $0xd0] sm:$0xff] %v2617
  %2697 = vst [vmem:[%s2 + $0xd8] sm:$0xff] %v2618
  %2698 = vst [vmem:[%s2 + $0xe0] sm:$0xff] %v2619
  %2699 = vst [vmem:[%s2 + $0xe8] sm:$0xff] %v2620
  %2700 = vst [vmem:[%s2 + $0xf0] sm:$0xff] %v2621
  %2701 = vst [vmem:[%s2 + $0xf8] sm:$0xff] %v2622
  %2702 = vst [vmem:[%s2 + $0x100] sm:$0xff] %v2623
  %2703 = vst [vmem:[%s2 + $0x108] sm:$0xff] %v2624
  %2704 = vst [vmem:[%s2 + $0x110] sm:$0xff] %v2625
  %2705 = vst [vmem:[%s2 + $0x118] sm:$0xff] %v2626
  %2706 = vst [vmem:[%s2 + $0x120] sm:$0xff] %v2627
  %2707 = vst [vmem:[%s2 + $0x128] sm:$0xff] %v2628
  %2708 = vst.msk [vmem:[%s2 + $0x130] sm:$0xff] %vm2681, %v2629
  %2709 = vst [vmem:[%s2 + $0x138] sm:$0xff] %v2630
  %2710 = vst [vmem:[%s2 + $0x140] sm:$0xff] %v2631
  %2711 = vst [vmem:[%s2 + $0x148] sm:$0xff] %v2632
  %2712 = vst [vmem:[%s2 + $0x150] sm:$0xff] %v2633
  %2713 = vst [vmem:[%s2 + $0x158] sm:$0xff] %v2634
  %2714 = vst [vmem:[%s2 + $0x160] sm:$0xff] %v2635
  %2715 = vst [vmem:[%s2 + $0x168] sm:$0xff] %v2636
  %2716 = vst [vmem:[%s2 + $0x170] sm:$0xff] %v2637
  %2717 = vst [vmem:[%s2 + $0x178] sm:$0xff] %v2638
  %2718 = vst [vmem:[%s2 + $0x180] sm:$0xff] %v2639
  %2719 = vst [vmem:[%s2 + $0x188] sm:$0xff] %v2640
  %2720 = vst [vmem:[%s2 + $0x190] sm:$0xff] %v2641
  %2721 = vst.msk [vmem:[%s2 + $0x198] sm:$0xff] %vm2681, %v2642
  %2722 = vst [vmem:[%s2 + $0x1a0] sm:$0xff] %v2643
  %2723 = vst [vmem:[%s2 + $0x1a8] sm:$0xff] %v2644
  %2724 = vst [vmem:[%s2 + $0x1b0] sm:$0xff] %v2645
  %2725 = vst [vmem:[%s2 + $0x1b8] sm:$0xff] %v2646
  %2726 = vst [vmem:[%s2 + $0x1c0] sm:$0xff] %v2647
  %2727 = vst [vmem:[%s2 + $0x1c8] sm:$0xff] %v2648
  %2728 = vst [vmem:[%s2 + $0x1d0] sm:$0xff] %v2649
  %2729 = vst [vmem:[%s2 + $0x1d8] sm:$0xff] %v2650
  %2730 = vst [vmem:[%s2 + $0x1e0] sm:$0xff] %v2651
  %2731 = vst [vmem:[%s2 + $0x1e8] sm:$0xff] %v2652
  %2732 = vst [vmem:[%s2 + $0x1f0] sm:$0xff] %v2653
  %2733 = vst [vmem:[%s2 + $0x1f8] sm:$0xff] %v2654
  %2734 = vst.msk [vmem:[%s2 + $0x200] sm:$0xff] %vm2681, %v2655
  %2735 = vst [vmem:[%s2 + $0x208] sm:$0x7] %v2656
  %2736 = vst [vmem:[%s2 + $0x210] sm:$0x7] %v2657
  %2737 = vst [vmem:[%s2 + $0x218] sm:$0x7] %v2658
  %2738 = vst [vmem:[%s2 + $0x220] sm:$0x7] %v2659
  %2739 = vst [vmem:[%s2 + $0x228] sm:$0x7] %v2660
  %2740 = vst [vmem:[%s2 + $0x230] sm:$0x7] %v2661
  %2741 = vst [vmem:[%s2 + $0x238] sm:$0x7] %v2662
  %2742 = vst [vmem:[%s2 + $0x240] sm:$0x7] %v2663
  %2743 = vst [vmem:[%s2 + $0x248] sm:$0x7] %v2664
  %2744 = vst [vmem:[%s2 + $0x250] sm:$0x7] %v2665
  %2745 = vst [vmem:[%s2 + $0x258] sm:$0x7] %v2666
  %2746 = vst [vmem:[%s2 + $0x260] sm:$0x7] %v2667
  %2747 = vst.msk [vmem:[%s2 + $0x268] sm:$0x7] %vm18, %v2668
  // Predicated region
  $region10: #{model_forward.1} parent=0 // pred_check
    _
  $region11: #{model_forward.1} parent=0 // pred_check_branch
    %2749 = sbr.rel (0) target = $region13
  $region12: #{model_forward.1} parent=0 // pred_region
    _
  $region13: #{model_forward.1} parent=0 // pred_fallthru
    _
  // Predicated region
  $region14: #{model_forward.1} parent=0 // pred_check
    _
  $region15: #{model_forward.1} parent=0 // pred_check_branch
    %2751 = sbr.rel (0) target = $region17
  $region16: #{model_forward.1} parent=0 // pred_region
    _
  $region17: #{model_forward.1} parent=0 // pred_fallthru
    _

</llo_original>
